<compile_context>
chip_gen: v7x
topology: tpu7x:2x2x1
jax: 0.10.0
libtpu: 0.0.40
codegen_flags: <defaults>
</compile_context>

<pallas_src>
import functools
import math

import jax
import jax.numpy as jnp
import numpy as np
from jax import lax
from jax.experimental import pallas as pl
from jax.experimental.pallas import tpu as pltpu


def _layer_norm(x, eps=1e-5):
    # F.layer_norm(x, (E,)) with no affine params.
    mu = jnp.mean(x, axis=-1, keepdims=True)
    var = jnp.mean((x - mu) ** 2, axis=-1, keepdims=True)
    return (x - mu) * lax.rsqrt(var + eps)


def transformer_layer_kernel(x_ref, wqkv_ref, bqkv_ref, w1_ref, b1_ref,
                             w2_ref, b2_ref, o_ref, attn_ref, *,
                             n_heads, head_dim, seq_len, batch_tile,
                             compute_dtype, approx_recip):
    bt = batch_tile
    n = seq_len
    m = bt * n
    e = n_heads * head_dim
    cd = compute_dtype
    scale = 1.0 / math.sqrt(head_dim)

    # ---- attention branch: x + Attn(LN(x)) ---------------------------------
    # Flatten (batch_tile, seq) -> M rows so projections are tall matmuls.
    x = x_ref[...].reshape(m, e).astype(jnp.float32)
    h = _layer_norm(x)
    qkv = jnp.dot(h.astype(cd), wqkv_ref[...],
                  preferred_element_type=jnp.float32) + bqkv_ref[...]  # (m, 3e) f32

    # Per-head attention.  QKV last-dim layout is (qkv, head, dim), so each
    # head's q/k/v live at static lane offsets.  The batch dimension inside the
    # tile goes through a batched einsum (no Python loop over batches, no k.T),
    # and each head's output is written directly into the (m, e) VMEM scratch
    # at its lane offset -> no concatenate, only one head live at a time.
    # TODO(synk): for large N, flash-tile this (block Q rows, stream K/V blocks
    #             with an online-softmax accumulator) instead of materializing
    #             the full (n, n) score matrix per head.
    for hd in range(n_heads):
        q = qkv[:, hd * head_dim:(hd + 1) * head_dim]
        k = qkv[:, e + hd * head_dim:e + (hd + 1) * head_dim]
        v = qkv[:, 2 * e + hd * head_dim:2 * e + (hd + 1) * head_dim]
        q = (q * scale).reshape(bt, n, head_dim).astype(cd)  # fold 1/sqrt(d) into q
        k = k.reshape(bt, n, head_dim).astype(cd)
        v = v.reshape(bt, n, head_dim).astype(cd)

        s = jnp.einsum('bqd,bkd->bqk', q, k,
                       preferred_element_type=jnp.float32)          # (bt, n, n)
        s = s - jnp.max(s, axis=-1, keepdims=True)
        p = jnp.exp(s)
        inv = pl.reciprocal(jnp.sum(p, axis=-1, keepdims=True),
                            approx=approx_recip)                     # EUP slot
        p = p * inv
        o = jnp.einsum('bqk,bkd->bqd', p.astype(cd), v,
                       preferred_element_type=jnp.float32)           # (bt, n, d)
        attn_ref[:, hd * head_dim:(hd + 1) * head_dim] = o.reshape(m, head_dim)

    x1 = x + attn_ref[...]

    # ---- MLP branch: x1 + W2(GELU(W1(LN(x1)))) ------------------------------
    h2 = _layer_norm(x1)
    ff = jnp.dot(h2.astype(cd), w1_ref[...],
                 preferred_element_type=jnp.float32) + b1_ref[...]   # (m, 4e)
    # exact (erf-based) GELU, matching torch.nn.GELU(approximate='none')
    # TODO(synk): on v5e a tanh-approx GELU would move this off the VALU (EUP
    #             tanh), but it changes numerics, so the exact form is kept.
    ff = 0.5 * ff * (1.0 + lax.erf(ff * (1.0 / math.sqrt(2.0))))
    ff = jnp.dot(ff.astype(cd), w2_ref[...],
                 preferred_element_type=jnp.float32) + b2_ref[...]   # (m, e)

    # dropout p=0.0 -> identity (TODO(synk): dropout not implemented for p>0)
    o_ref[...] = (x1 + ff).reshape(bt, n, e).astype(o_ref.dtype)


def transformer_layer(x, wqkv, bqkv, w1, b1, w2, b2, *, n_heads,
                      compute_dtype=jnp.bfloat16):
    B, N, E = x.shape
    assert E % n_heads == 0
    head_dim = E // n_heads

    # --- pick a batch tile so the matmul M dimension (bt*N rows) is large ----
    target_rows = 256
    bt = max(1, min(B, target_rows // max(N, 1)))
    while B % bt:
        bt -= 1
    # prefer >=2 grid steps (v7x has 2 TensorCores) if tiles stay >=128 rows
    if bt == B and B % 2 == 0 and (B // 2) * N >= 128:
        bt = B // 2
    grid = (B // bt,)

    cd = jnp.dtype(compute_dtype)
    approx_recip = bool(cd != jnp.dtype(jnp.float32))

    # weights pre-transposed to (in, out), stored in the matmul compute dtype
    # (halves weight VMEM/HBM traffic when bf16); biases stay f32.
    wqkv_c = wqkv.astype(cd)
    w1_c = w1.astype(cd)
    w2_c = w2.astype(cd)
    bqkv_r = bqkv.reshape(1, 3 * E).astype(jnp.float32)
    b1_r = b1.reshape(1, 4 * E).astype(jnp.float32)
    b2_r = b2.reshape(1, E).astype(jnp.float32)

    # --- explicit VMEM budget -------------------------------------------------
    m = bt * N
    wbytes = (wqkv_c.size + w1_c.size + w2_c.size) * cd.itemsize
    bbytes = (bqkv_r.size + b1_r.size + b2_r.size) * 4
    io_bytes = 2 * 2 * (bt * N * E * x.dtype.itemsize)        # x/out, double-buffered
    scratch_bytes = m * E * 4
    temp_bytes = 4 * m * (3 * E + 4 * E) * 4                  # qkv/ff temporaries + slack
    est = 2 * wbytes + bbytes + io_bytes + scratch_bytes + temp_bytes
    vmem_limit = int(min(64 * 1024 * 1024, max(2 * est, 16 * 1024 * 1024)))

    kernel = functools.partial(
        transformer_layer_kernel,
        n_heads=n_heads, head_dim=head_dim, seq_len=N, batch_tile=bt,
        compute_dtype=cd, approx_recip=approx_recip)

    def weight_spec(shape):
        # constant-index weight tiles (same block every grid step).
        # TODO(synk): for very large E on v7x (64 MiB VMEM), single-buffer these
        #             (pipeline_mode=pl.Buffered(1)) to halve their footprint.
        return pl.BlockSpec(shape, lambda b: (0,) * len(shape))

    # Note: block last dim = E (full extent).  For realistic E (multiple of
    # 128) this is lane-dense; at tiny E it is inherently lane-sparse.
    return pl.pallas_call(
        kernel,
        out_shape=jax.ShapeDtypeStruct((B, N, E), x.dtype),
        grid=grid,
        in_specs=[
            pl.BlockSpec((bt, N, E), lambda b: (b, 0, 0)),   # x, one batch tile per step
            weight_spec((E, 3 * E)),                         # Wqkv^T (compute dtype)
            weight_spec((1, 3 * E)),                         # b_qkv  (f32)
            weight_spec((E, 4 * E)),                         # W1^T
            weight_spec((1, 4 * E)),                         # b1
            weight_spec((4 * E, E)),                         # W2^T
            weight_spec((1, E)),                             # b2
        ],
        out_specs=pl.BlockSpec((bt, N, E), lambda b: (b, 0, 0)),
        scratch_shapes=[pltpu.VMEM((bt * N, E), jnp.float32)],   # attention output slab
        compiler_params=pltpu.CompilerParams(
            dimension_semantics=("parallel",),
            vmem_limit_bytes=vmem_limit),
    )(x, wqkv_c, bqkv_r, w1_c, b1_r, w2_c, b2_r)


def _torch_linear_init(key, out_f, in_f):
    # nn.Linear default init: U(-1/sqrt(in), 1/sqrt(in)) for weight and bias.
    kw, kb = jax.random.split(key)
    bound = 1.0 / math.sqrt(in_f)
    w = jax.random.uniform(kw, (out_f, in_f), jnp.float32, -bound, bound)
    b = jax.random.uniform(kb, (out_f,), jnp.float32, -bound, bound)
    return w, b


def reference_forward(x, wqkv, bqkv, w1, b1, w2, b2, *, n_heads):
    # pure-JAX reference matching the PyTorch module (causal=False, dropout=0)
    B, N, E = x.shape
    d = E // n_heads

    def ln(z):
        mu = jnp.mean(z, axis=-1, keepdims=True)
        var = jnp.mean((z - mu) ** 2, axis=-1, keepdims=True)
        return (z - mu) / jnp.sqrt(var + 1e-5)

    h = ln(x)
    qkv = h @ wqkv + bqkv                                   # (B, N, 3E)
    qkv = qkv.reshape(B, N, 3, n_heads, d)                  # (qkv, h, d) split
    q = jnp.transpose(qkv[:, :, 0], (0, 2, 1, 3))           # (B, H, N, d)
    k = jnp.transpose(qkv[:, :, 1], (0, 2, 1, 3))
    v = jnp.transpose(qkv[:, :, 2], (0, 2, 1, 3))
    s = jnp.einsum('bhqd,bhkd->bhqk', q, k) / math.sqrt(d)
    p = jax.nn.softmax(s, axis=-1)
    o = jnp.einsum('bhqk,bhkd->bhqd', p, v)                 # (B, H, N, d)
    o = jnp.transpose(o, (0, 2, 1, 3)).reshape(B, N, E)
    x1 = x + o
    h2 = ln(x1)
    ff = h2 @ w1 + b1
    ff = 0.5 * ff * (1.0 + lax.erf(ff / math.sqrt(2.0)))
    ff = ff @ w2 + b2
    return x1 + ff


if __name__ == "__main__":
    # config: n_layers=1, n_heads=4, n_embd=32, block_size=8, causal=False, dropout=0.0
    B, N, E, H = 2, 8, 32, 4

    root = jax.random.PRNGKey(0)
    kx, kqkv, k1, k2 = jax.random.split(root, 4)

    x = jax.random.normal(kx, (B, N, E), jnp.float32)

    wqkv_pt, bqkv = _torch_linear_init(kqkv, 3 * E, E)      # (3E, E), (3E,)
    w1_pt, b1 = _torch_linear_init(k1, 4 * E, E)            # (4E, E), (4E,)
    w2_pt, b2 = _torch_linear_init(k2, E, 4 * E)            # (E, 4E), (E,)

    # pre-transpose weights to (in, out)
    wqkv, w1, w2 = wqkv_pt.T, w1_pt.T, w2_pt.T

    ref = reference_forward(x, wqkv, bqkv, w1, b1, w2, b2, n_heads=H)

    # 1) exact-parity path: f32 matmul inputs, exact softmax reciprocal.
    out_f32 = transformer_layer(x, wqkv, bqkv, w1, b1, w2, b2,
                                n_heads=H, compute_dtype=jnp.float32)
    out_f32 = jax.block_until_ready(out_f32)
    np.testing.assert_allclose(np.asarray(out_f32), np.asarray(ref),
                               rtol=2e-4, atol=2e-4)

    # 2) performance path: bf16 MXU inputs, f32 accumulation, approx reciprocal.
    out_bf16 = transformer_layer(x, wqkv, bqkv, w1, b1, w2, b2,
                                 n_heads=H, compute_dtype=jnp.bfloat16)
    out_bf16 = jax.block_until_ready(out_bf16)
    np.testing.assert_allclose(np.asarray(out_bf16), np.asarray(ref),
                               rtol=5e-2, atol=5e-2)

    print("KERNEL_OK")
</pallas_src>

<mosaic_0001>
module attributes {stable_mosaic.version = 11 : i64} {
  func.func @transformer_layer_kernel(%arg0: i32, %arg1: memref<2x8x32xf32, #tpu.memory_space<vmem>>, %arg2: memref<32x96xf32, #tpu.memory_space<vmem>>, %arg3: memref<1x96xf32, #tpu.memory_space<vmem>>, %arg4: memref<32x128xf32, #tpu.memory_space<vmem>>, %arg5: memref<1x128xf32, #tpu.memory_space<vmem>>, %arg6: memref<128x32xf32, #tpu.memory_space<vmem>>, %arg7: memref<1x32xf32, #tpu.memory_space<vmem>>, %arg8: memref<2x8x32xf32, #tpu.memory_space<vmem>>, %arg9: memref<16x32xf32, #tpu.memory_space<vmem>>) attributes {dimension_semantics = [#tpu.dimension_semantics<parallel>], iteration_bounds = array<i64: 1>, scalar_prefetch = 0 : i64, scratch_operands = 1 : i64, tpu.core_type = #tpu.core_type<tc>, window_params = [{transform_indices = @transform_0, window_bounds = array<i64: 2, 8, 32>}, {pipeline_mode = #tpu.pipeline_mode<synchronous>, transform_indices = @transform_1, window_bounds = array<i64: 32, 96>}, {pipeline_mode = #tpu.pipeline_mode<synchronous>, transform_indices = @transform_2, window_bounds = array<i64: 1, 96>}, {pipeline_mode = #tpu.pipeline_mode<synchronous>, transform_indices = @transform_3, window_bounds = array<i64: 32, 128>}, {pipeline_mode = #tpu.pipeline_mode<synchronous>, transform_indices = @transform_4, window_bounds = array<i64: 1, 128>}, {pipeline_mode = #tpu.pipeline_mode<synchronous>, transform_indices = @transform_5, window_bounds = array<i64: 128, 32>}, {pipeline_mode = #tpu.pipeline_mode<synchronous>, transform_indices = @transform_6, window_bounds = array<i64: 1, 32>}, {transform_indices = @transform_7, window_bounds = array<i64: 2, 8, 32>}]} {
    %c0 = arith.constant 0 : index
    %c0_0 = arith.constant 0 : index
    %c0_1 = arith.constant 0 : index
    %0 = vector.load %arg1[%c0, %c0_0, %c0_1] : memref<2x8x32xf32, #tpu.memory_space<vmem>>, vector<2x8x32xf32>
    %1 = vector.shape_cast %0 : vector<2x8x32xf32> to vector<16x32xf32>
    %cst = arith.constant dense<0.000000e+00> : vector<16xf32>
    %2 = vector.multi_reduction <add>, %1, %cst [1] : vector<16x32xf32> to vector<16xf32>
    %3 = vector.shape_cast %2 : vector<16xf32> to vector<16x1xf32>
    %cst_2 = arith.constant 3.200000e+01 : f32
    %4 = vector.broadcast %cst_2 : f32 to vector<16x1xf32>
    %5 = arith.divf %3, %4 : vector<16x1xf32>
    %6 = vector.broadcast %5 : vector<16x1xf32> to vector<16x32xf32>
    %7 = arith.subf %1, %6 : vector<16x32xf32>
    %8 = arith.mulf %7, %7 : vector<16x32xf32>
    %cst_3 = arith.constant dense<0.000000e+00> : vector<16xf32>
    %9 = vector.multi_reduction <add>, %8, %cst_3 [1] : vector<16x32xf32> to vector<16xf32>
    %10 = vector.shape_cast %9 : vector<16xf32> to vector<16x1xf32>
    %cst_4 = arith.constant 3.200000e+01 : f32
    %11 = vector.broadcast %cst_4 : f32 to vector<16x1xf32>
    %12 = arith.divf %10, %11 : vector<16x1xf32>
    %13 = vector.broadcast %5 : vector<16x1xf32> to vector<16x32xf32>
    %14 = arith.subf %1, %13 : vector<16x32xf32>
    %cst_5 = arith.constant 9.99999974E-6 : f32
    %15 = vector.broadcast %cst_5 : f32 to vector<16x1xf32>
    %16 = arith.addf %12, %15 : vector<16x1xf32>
    %17 = math.rsqrt %16 : vector<16x1xf32>
    %18 = vector.broadcast %17 : vector<16x1xf32> to vector<16x32xf32>
    %19 = arith.mulf %14, %18 : vector<16x32xf32>
    %c0_6 = arith.constant 0 : index
    %c0_7 = arith.constant 0 : index
    %20 = vector.load %arg2[%c0_6, %c0_7] : memref<32x96xf32, #tpu.memory_space<vmem>>, vector<32x96xf32>
    %cst_8 = arith.constant dense<0.000000e+00> : vector<16x96xf32>
    %21 = tpu.matmul %19, %20, %cst_8 {dimension_numbers = #tpu.dot_dimension_numbers<[1], [0], [0], [1], [0, 0, 1, 1], [], []>} : vector<16x32xf32>, vector<32x96xf32>, vector<16x96xf32> -> vector<16x96xf32>
    %c0_9 = arith.constant 0 : index
    %c0_10 = arith.constant 0 : index
    %22 = vector.load %arg3[%c0_9, %c0_10] : memref<1x96xf32, #tpu.memory_space<vmem>>, vector<1x96xf32>
    %23 = vector.broadcast %22 : vector<1x96xf32> to vector<16x96xf32>
    %24 = arith.addf %21, %23 : vector<16x96xf32>
    %25 = vector.extract_strided_slice %24 {offsets = [0, 0], sizes = [16, 8], strides = [1, 1]} : vector<16x96xf32> to vector<16x8xf32>
    %26 = vector.extract_strided_slice %24 {offsets = [0, 32], sizes = [16, 8], strides = [1, 1]} : vector<16x96xf32> to vector<16x8xf32>
    %27 = vector.extract_strided_slice %24 {offsets = [0, 64], sizes = [16, 8], strides = [1, 1]} : vector<16x96xf32> to vector<16x8xf32>
    %cst_11 = arith.constant 0.353553385 : f32
    %28 = vector.broadcast %cst_11 : f32 to vector<16x8xf32>
    %29 = arith.mulf %25, %28 : vector<16x8xf32>
    %30 = vector.shape_cast %29 : vector<16x8xf32> to vector<2x8x8xf32>
    %31 = vector.shape_cast %26 : vector<16x8xf32> to vector<2x8x8xf32>
    %32 = vector.shape_cast %27 : vector<16x8xf32> to vector<2x8x8xf32>
    "tpu.trace_start"() <{level = 10 : i32, message = "bqd,bkd->bqk"}> : () -> ()
    %cst_12 = arith.constant dense<0.000000e+00> : vector<2x8x8xf32>
    %33 = tpu.matmul %30, %31, %cst_12 {dimension_numbers = #tpu.dot_dimension_numbers<[2], [2], [1], [1], [0, 0, 0, 1, 1, 1], [0], [0]>} : vector<2x8x8xf32>, vector<2x8x8xf32>, vector<2x8x8xf32> -> vector<2x8x8xf32>
    "tpu.trace_stop"() : () -> ()
    %cst_13 = arith.constant dense<0xFF800000> : vector<2x8xf32>
    %34 = vector.multi_reduction <maximumf>, %33, %cst_13 [2] : vector<2x8x8xf32> to vector<2x8xf32>
    %35 = vector.shape_cast %34 : vector<2x8xf32> to vector<2x8x1xf32>
    %36 = vector.broadcast %35 : vector<2x8x1xf32> to vector<2x8x8xf32>
    %37 = arith.subf %33, %36 : vector<2x8x8xf32>
    %38 = math.exp %37 : vector<2x8x8xf32>
    %cst_14 = arith.constant dense<0.000000e+00> : vector<2x8xf32>
    %39 = vector.multi_reduction <add>, %38, %cst_14 [2] : vector<2x8x8xf32> to vector<2x8xf32>
    %40 = vector.shape_cast %39 : vector<2x8xf32> to vector<2x8x1xf32>
    %41 = tpu.reciprocal %40 : vector<2x8x1xf32> -> vector<2x8x1xf32>
    %42 = vector.broadcast %41 : vector<2x8x1xf32> to vector<2x8x8xf32>
    %43 = arith.mulf %38, %42 : vector<2x8x8xf32>
    "tpu.trace_start"() <{level = 10 : i32, message = "bqk,bkd->bqd"}> : () -> ()
    %cst_15 = arith.constant dense<0.000000e+00> : vector<2x8x8xf32>
    %44 = tpu.matmul %43, %32, %cst_15 {dimension_numbers = #tpu.dot_dimension_numbers<[2], [1], [1], [2], [0, 0, 0, 1, 1, 2], [0], [0]>} : vector<2x8x8xf32>, vector<2x8x8xf32>, vector<2x8x8xf32> -> vector<2x8x8xf32>
    "tpu.trace_stop"() : () -> ()
    %45 = vector.shape_cast %44 : vector<2x8x8xf32> to vector<16x8xf32>
    %c0_16 = arith.constant 0 : index
    %c0_17 = arith.constant 0 : index
    %46 = vector.load %arg9[%c0_16, %c0_17] : memref<16x32xf32, #tpu.memory_space<vmem>>, vector<16x8xf32>
    tpu.vector_store %arg9[%c0_16, %c0_17], %45 {strides = array<i32>} : memref<16x32xf32, #tpu.memory_space<vmem>>, vector<16x8xf32>,
    %47 = vector.extract_strided_slice %24 {offsets = [0, 8], sizes = [16, 8], strides = [1, 1]} : vector<16x96xf32> to vector<16x8xf32>
    %48 = vector.extract_strided_slice %24 {offsets = [0, 40], sizes = [16, 8], strides = [1, 1]} : vector<16x96xf32> to vector<16x8xf32>
    %49 = vector.extract_strided_slice %24 {offsets = [0, 72], sizes = [16, 8], strides = [1, 1]} : vector<16x96xf32> to vector<16x8xf32>
    %cst_18 = arith.constant 0.353553385 : f32
    %50 = vector.broadcast %cst_18 : f32 to vector<16x8xf32>
    %51 = arith.mulf %47, %50 : vector<16x8xf32>
    %52 = vector.shape_cast %51 : vector<16x8xf32> to vector<2x8x8xf32>
    %53 = vector.shape_cast %48 : vector<16x8xf32> to vector<2x8x8xf32>
    %54 = vector.shape_cast %49 : vector<16x8xf32> to vector<2x8x8xf32>
    "tpu.trace_start"() <{level = 10 : i32, message = "bqd,bkd->bqk"}> : () -> ()
    %cst_19 = arith.constant dense<0.000000e+00> : vector<2x8x8xf32>
    %55 = tpu.matmul %52, %53, %cst_19 {dimension_numbers = #tpu.dot_dimension_numbers<[2], [2], [1], [1], [0, 0, 0, 1, 1, 1], [0], [0]>} : vector<2x8x8xf32>, vector<2x8x8xf32>, vector<2x8x8xf32> -> vector<2x8x8xf32>
    "tpu.trace_stop"() : () -> ()
    %cst_20 = arith.constant dense<0xFF800000> : vector<2x8xf32>
    %56 = vector.multi_reduction <maximumf>, %55, %cst_20 [2] : vector<2x8x8xf32> to vector<2x8xf32>
    %57 = vector.shape_cast %56 : vector<2x8xf32> to vector<2x8x1xf32>
    %58 = vector.broadcast %57 : vector<2x8x1xf32> to vector<2x8x8xf32>
    %59 = arith.subf %55, %58 : vector<2x8x8xf32>
    %60 = math.exp %59 : vector<2x8x8xf32>
    %cst_21 = arith.constant dense<0.000000e+00> : vector<2x8xf32>
    %61 = vector.multi_reduction <add>, %60, %cst_21 [2] : vector<2x8x8xf32> to vector<2x8xf32>
    %62 = vector.shape_cast %61 : vector<2x8xf32> to vector<2x8x1xf32>
    %63 = tpu.reciprocal %62 : vector<2x8x1xf32> -> vector<2x8x1xf32>
    %64 = vector.broadcast %63 : vector<2x8x1xf32> to vector<2x8x8xf32>
    %65 = arith.mulf %60, %64 : vector<2x8x8xf32>
    "tpu.trace_start"() <{level = 10 : i32, message = "bqk,bkd->bqd"}> : () -> ()
    %cst_22 = arith.constant dense<0.000000e+00> : vector<2x8x8xf32>
    %66 = tpu.matmul %65, %54, %cst_22 {dimension_numbers = #tpu.dot_dimension_numbers<[2], [1], [1], [2], [0, 0, 0, 1, 1, 2], [0], [0]>} : vector<2x8x8xf32>, vector<2x8x8xf32>, vector<2x8x8xf32> -> vector<2x8x8xf32>
    "tpu.trace_stop"() : () -> ()
    %67 = vector.shape_cast %66 : vector<2x8x8xf32> to vector<16x8xf32>
    %c0_23 = arith.constant 0 : index
    %c8 = arith.constant 8 : index
    %68 = vector.load %arg9[%c0_23, %c8] : memref<16x32xf32, #tpu.memory_space<vmem>>, vector<16x8xf32>
    tpu.vector_store %arg9[%c0_23, %c8], %67 {strides = array<i32>} : memref<16x32xf32, #tpu.memory_space<vmem>>, vector<16x8xf32>,
    %69 = vector.extract_strided_slice %24 {offsets = [0, 16], sizes = [16, 8], strides = [1, 1]} : vector<16x96xf32> to vector<16x8xf32>
    %70 = vector.extract_strided_slice %24 {offsets = [0, 48], sizes = [16, 8], strides = [1, 1]} : vector<16x96xf32> to vector<16x8xf32>
    %71 = vector.extract_strided_slice %24 {offsets = [0, 80], sizes = [16, 8], strides = [1, 1]} : vector<16x96xf32> to vector<16x8xf32>
    %cst_24 = arith.constant 0.353553385 : f32
    %72 = vector.broadcast %cst_24 : f32 to vector<16x8xf32>
    %73 = arith.mulf %69, %72 : vector<16x8xf32>
    %74 = vector.shape_cast %73 : vector<16x8xf32> to vector<2x8x8xf32>
    %75 = vector.shape_cast %70 : vector<16x8xf32> to vector<2x8x8xf32>
    %76 = vector.shape_cast %71 : vector<16x8xf32> to vector<2x8x8xf32>
    "tpu.trace_start"() <{level = 10 : i32, message = "bqd,bkd->bqk"}> : () -> ()
    %cst_25 = arith.constant dense<0.000000e+00> : vector<2x8x8xf32>
    %77 = tpu.matmul %74, %75, %cst_25 {dimension_numbers = #tpu.dot_dimension_numbers<[2], [2], [1], [1], [0, 0, 0, 1, 1, 1], [0], [0]>} : vector<2x8x8xf32>, vector<2x8x8xf32>, vector<2x8x8xf32> -> vector<2x8x8xf32>
    "tpu.trace_stop"() : () -> ()
    %cst_26 = arith.constant dense<0xFF800000> : vector<2x8xf32>
    %78 = vector.multi_reduction <maximumf>, %77, %cst_26 [2] : vector<2x8x8xf32> to vector<2x8xf32>
    %79 = vector.shape_cast %78 : vector<2x8xf32> to vector<2x8x1xf32>
    %80 = vector.broadcast %79 : vector<2x8x1xf32> to vector<2x8x8xf32>
    %81 = arith.subf %77, %80 : vector<2x8x8xf32>
    %82 = math.exp %81 : vector<2x8x8xf32>
    %cst_27 = arith.constant dense<0.000000e+00> : vector<2x8xf32>
    %83 = vector.multi_reduction <add>, %82, %cst_27 [2] : vector<2x8x8xf32> to vector<2x8xf32>
    %84 = vector.shape_cast %83 : vector<2x8xf32> to vector<2x8x1xf32>
    %85 = tpu.reciprocal %84 : vector<2x8x1xf32> -> vector<2x8x1xf32>
    %86 = vector.broadcast %85 : vector<2x8x1xf32> to vector<2x8x8xf32>
    %87 = arith.mulf %82, %86 : vector<2x8x8xf32>
    "tpu.trace_start"() <{level = 10 : i32, message = "bqk,bkd->bqd"}> : () -> ()
    %cst_28 = arith.constant dense<0.000000e+00> : vector<2x8x8xf32>
    %88 = tpu.matmul %87, %76, %cst_28 {dimension_numbers = #tpu.dot_dimension_numbers<[2], [1], [1], [2], [0, 0, 0, 1, 1, 2], [0], [0]>} : vector<2x8x8xf32>, vector<2x8x8xf32>, vector<2x8x8xf32> -> vector<2x8x8xf32>
    "tpu.trace_stop"() : () -> ()
    %89 = vector.shape_cast %88 : vector<2x8x8xf32> to vector<16x8xf32>
    %c0_29 = arith.constant 0 : index
    %c16 = arith.constant 16 : index
    %90 = vector.load %arg9[%c0_29, %c16] : memref<16x32xf32, #tpu.memory_space<vmem>>, vector<16x8xf32>
    tpu.vector_store %arg9[%c0_29, %c16], %89 {strides = array<i32>} : memref<16x32xf32, #tpu.memory_space<vmem>>, vector<16x8xf32>,
    %91 = vector.extract_strided_slice %24 {offsets = [0, 24], sizes = [16, 8], strides = [1, 1]} : vector<16x96xf32> to vector<16x8xf32>
    %92 = vector.extract_strided_slice %24 {offsets = [0, 56], sizes = [16, 8], strides = [1, 1]} : vector<16x96xf32> to vector<16x8xf32>
    %93 = vector.extract_strided_slice %24 {offsets = [0, 88], sizes = [16, 8], strides = [1, 1]} : vector<16x96xf32> to vector<16x8xf32>
    %cst_30 = arith.constant 0.353553385 : f32
    %94 = vector.broadcast %cst_30 : f32 to vector<16x8xf32>
    %95 = arith.mulf %91, %94 : vector<16x8xf32>
    %96 = vector.shape_cast %95 : vector<16x8xf32> to vector<2x8x8xf32>
    %97 = vector.shape_cast %92 : vector<16x8xf32> to vector<2x8x8xf32>
    %98 = vector.shape_cast %93 : vector<16x8xf32> to vector<2x8x8xf32>
    "tpu.trace_start"() <{level = 10 : i32, message = "bqd,bkd->bqk"}> : () -> ()
    %cst_31 = arith.constant dense<0.000000e+00> : vector<2x8x8xf32>
    %99 = tpu.matmul %96, %97, %cst_31 {dimension_numbers = #tpu.dot_dimension_numbers<[2], [2], [1], [1], [0, 0, 0, 1, 1, 1], [0], [0]>} : vector<2x8x8xf32>, vector<2x8x8xf32>, vector<2x8x8xf32> -> vector<2x8x8xf32>
    "tpu.trace_stop"() : () -> ()
    %cst_32 = arith.constant dense<0xFF800000> : vector<2x8xf32>
    %100 = vector.multi_reduction <maximumf>, %99, %cst_32 [2] : vector<2x8x8xf32> to vector<2x8xf32>
    %101 = vector.shape_cast %100 : vector<2x8xf32> to vector<2x8x1xf32>
    %102 = vector.broadcast %101 : vector<2x8x1xf32> to vector<2x8x8xf32>
    %103 = arith.subf %99, %102 : vector<2x8x8xf32>
    %104 = math.exp %103 : vector<2x8x8xf32>
    %cst_33 = arith.constant dense<0.000000e+00> : vector<2x8xf32>
    %105 = vector.multi_reduction <add>, %104, %cst_33 [2] : vector<2x8x8xf32> to vector<2x8xf32>
    %106 = vector.shape_cast %105 : vector<2x8xf32> to vector<2x8x1xf32>
    %107 = tpu.reciprocal %106 : vector<2x8x1xf32> -> vector<2x8x1xf32>
    %108 = vector.broadcast %107 : vector<2x8x1xf32> to vector<2x8x8xf32>
    %109 = arith.mulf %104, %108 : vector<2x8x8xf32>
    "tpu.trace_start"() <{level = 10 : i32, message = "bqk,bkd->bqd"}> : () -> ()
    %cst_34 = arith.constant dense<0.000000e+00> : vector<2x8x8xf32>
    %110 = tpu.matmul %109, %98, %cst_34 {dimension_numbers = #tpu.dot_dimension_numbers<[2], [1], [1], [2], [0, 0, 0, 1, 1, 2], [0], [0]>} : vector<2x8x8xf32>, vector<2x8x8xf32>, vector<2x8x8xf32> -> vector<2x8x8xf32>
    "tpu.trace_stop"() : () -> ()
    %111 = vector.shape_cast %110 : vector<2x8x8xf32> to vector<16x8xf32>
    %c0_35 = arith.constant 0 : index
    %c24 = arith.constant 24 : index
    %112 = vector.load %arg9[%c0_35, %c24] : memref<16x32xf32, #tpu.memory_space<vmem>>, vector<16x8xf32>
    tpu.vector_store %arg9[%c0_35, %c24], %111 {strides = array<i32>} : memref<16x32xf32, #tpu.memory_space<vmem>>, vector<16x8xf32>,
    %c0_36 = arith.constant 0 : index
    %c0_37 = arith.constant 0 : index
    %113 = vector.load %arg9[%c0_36, %c0_37] : memref<16x32xf32, #tpu.memory_space<vmem>>, vector<16x32xf32>
    %114 = arith.addf %1, %113 : vector<16x32xf32>
    %cst_38 = arith.constant dense<0.000000e+00> : vector<16xf32>
    %115 = vector.multi_reduction <add>, %114, %cst_38 [1] : vector<16x32xf32> to vector<16xf32>
    %116 = vector.shape_cast %115 : vector<16xf32> to vector<16x1xf32>
    %cst_39 = arith.constant 3.200000e+01 : f32
    %117 = vector.broadcast %cst_39 : f32 to vector<16x1xf32>
    %118 = arith.divf %116, %117 : vector<16x1xf32>
    %119 = vector.broadcast %118 : vector<16x1xf32> to vector<16x32xf32>
    %120 = arith.subf %114, %119 : vector<16x32xf32>
    %121 = arith.mulf %120, %120 : vector<16x32xf32>
    %cst_40 = arith.constant dense<0.000000e+00> : vector<16xf32>
    %122 = vector.multi_reduction <add>, %121, %cst_40 [1] : vector<16x32xf32> to vector<16xf32>
    %123 = vector.shape_cast %122 : vector<16xf32> to vector<16x1xf32>
    %cst_41 = arith.constant 3.200000e+01 : f32
    %124 = vector.broadcast %cst_41 : f32 to vector<16x1xf32>
    %125 = arith.divf %123, %124 : vector<16x1xf32>
    %126 = vector.broadcast %118 : vector<16x1xf32> to vector<16x32xf32>
    %127 = arith.subf %114, %126 : vector<16x32xf32>
    %cst_42 = arith.constant 9.99999974E-6 : f32
    %128 = vector.broadcast %cst_42 : f32 to vector<16x1xf32>
    %129 = arith.addf %125, %128 : vector<16x1xf32>
    %130 = math.rsqrt %129 : vector<16x1xf32>
    %131 = vector.broadcast %130 : vector<16x1xf32> to vector<16x32xf32>
    %132 = arith.mulf %127, %131 : vector<16x32xf32>
    %c0_43 = arith.constant 0 : index
    %c0_44 = arith.constant 0 : index
    %133 = vector.load %arg4[%c0_43, %c0_44] : memref<32x128xf32, #tpu.memory_space<vmem>>, vector<32x128xf32>
    %cst_45 = arith.constant dense<0.000000e+00> : vector<16x128xf32>
    %134 = tpu.matmul %132, %133, %cst_45 {dimension_numbers = #tpu.dot_dimension_numbers<[1], [0], [0], [1], [0, 0, 1, 1], [], []>} : vector<16x32xf32>, vector<32x128xf32>, vector<16x128xf32> -> vector<16x128xf32>
    %c0_46 = arith.constant 0 : index
    %c0_47 = arith.constant 0 : index
    %135 = vector.load %arg5[%c0_46, %c0_47] : memref<1x128xf32, #tpu.memory_space<vmem>>, vector<1x128xf32>
    %136 = vector.broadcast %135 : vector<1x128xf32> to vector<16x128xf32>
    %137 = arith.addf %134, %136 : vector<16x128xf32>
    %cst_48 = arith.constant 5.000000e-01 : f32
    %138 = vector.broadcast %cst_48 : f32 to vector<16x128xf32>
    %139 = arith.mulf %138, %137 : vector<16x128xf32>
    %cst_49 = arith.constant 0.707106769 : f32
    %140 = vector.broadcast %cst_49 : f32 to vector<16x128xf32>
    %141 = arith.mulf %137, %140 : vector<16x128xf32>
    %142 = math.erf %141 : vector<16x128xf32>
    %cst_50 = arith.constant 1.000000e+00 : f32
    %143 = vector.broadcast %cst_50 : f32 to vector<16x128xf32>
    %144 = arith.addf %143, %142 : vector<16x128xf32>
    %145 = arith.mulf %139, %144 : vector<16x128xf32>
    %c0_51 = arith.constant 0 : index
    %c0_52 = arith.constant 0 : index
    %146 = vector.load %arg6[%c0_51, %c0_52] : memref<128x32xf32, #tpu.memory_space<vmem>>, vector<128x32xf32>
    %cst_53 = arith.constant dense<0.000000e+00> : vector<16x32xf32>
    %147 = tpu.matmul %145, %146, %cst_53 {dimension_numbers = #tpu.dot_dimension_numbers<[1], [0], [0], [1], [0, 0, 1, 1], [], []>} : vector<16x128xf32>, vector<128x32xf32>, vector<16x32xf32> -> vector<16x32xf32>
    %c0_54 = arith.constant 0 : index
    %c0_55 = arith.constant 0 : index
    %148 = vector.load %arg7[%c0_54, %c0_55] : memref<1x32xf32, #tpu.memory_space<vmem>>, vector<1x32xf32>
    %149 = vector.broadcast %148 : vector<1x32xf32> to vector<16x32xf32>
    %150 = arith.addf %147, %149 : vector<16x32xf32>
    %151 = arith.addf %114, %150 : vector<16x32xf32>
    %152 = vector.shape_cast %151 : vector<16x32xf32> to vector<2x8x32xf32>
    %c0_56 = arith.constant 0 : index
    %c0_57 = arith.constant 0 : index
    %c0_58 = arith.constant 0 : index
    %153 = vector.load %arg8[%c0_56, %c0_57, %c0_58] : memref<2x8x32xf32, #tpu.memory_space<vmem>>, vector<2x8x32xf32>
    tpu.vector_store %arg8[%c0_56, %c0_57, %c0_58], %152 {strides = array<i32>} : memref<2x8x32xf32, #tpu.memory_space<vmem>>, vector<2x8x32xf32>,
    return
  }
  func.func @transform_0(%arg0: i32) -> (i32, i32, i32) {
    %c0_i32 = arith.constant 0 : i32
    %c0_i32_0 = arith.constant 0 : i32
    %c0_i32_1 = arith.constant 0 : i32
    return %arg0, %c0_i32, %c0_i32_0 : i32, i32, i32
  }
  func.func @transform_1(%arg0: i32) -> (i32, i32) {
    %c0_i32 = arith.constant 0 : i32
    %c0_i32_0 = arith.constant 0 : i32
    %c0_i32_1 = arith.constant 0 : i32
    return %c0_i32, %c0_i32_0 : i32, i32
  }
  func.func @transform_2(%arg0: i32) -> (i32, i32) {
    %c0_i32 = arith.constant 0 : i32
    %c0_i32_0 = arith.constant 0 : i32
    %c0_i32_1 = arith.constant 0 : i32
    return %c0_i32, %c0_i32_0 : i32, i32
  }
  func.func @transform_3(%arg0: i32) -> (i32, i32) {
    %c0_i32 = arith.constant 0 : i32
    %c0_i32_0 = arith.constant 0 : i32
    %c0_i32_1 = arith.constant 0 : i32
    return %c0_i32, %c0_i32_0 : i32, i32
  }
  func.func @transform_4(%arg0: i32) -> (i32, i32) {
    %c0_i32 = arith.constant 0 : i32
    %c0_i32_0 = arith.constant 0 : i32
    %c0_i32_1 = arith.constant 0 : i32
    return %c0_i32, %c0_i32_0 : i32, i32
  }
  func.func @transform_5(%arg0: i32) -> (i32, i32) {
    %c0_i32 = arith.constant 0 : i32
    %c0_i32_0 = arith.constant 0 : i32
    %c0_i32_1 = arith.constant 0 : i32
    return %c0_i32, %c0_i32_0 : i32, i32
  }
  func.func @transform_6(%arg0: i32) -> (i32, i32) {
    %c0_i32 = arith.constant 0 : i32
    %c0_i32_0 = arith.constant 0 : i32
    %c0_i32_1 = arith.constant 0 : i32
    return %c0_i32, %c0_i32_0 : i32, i32
  }
  func.func @transform_7(%arg0: i32) -> (i32, i32, i32) {
    %c0_i32 = arith.constant 0 : i32
    %c0_i32_0 = arith.constant 0 : i32
    %c0_i32_1 = arith.constant 0 : i32
    return %arg0, %c0_i32, %c0_i32_0 : i32, i32, i32
  }
}

</mosaic_0001>

<llo_original>
// kernel: tpu_custom_call.1
$region0: #{tpu_custom_call.1}
  #allocation0 [shape = 'u32[]', space=smem, size = 0x4, offset = 0x4, fixed_abs, tag = 'smem constant byte address 0x4 - core index']
  #allocation1 [shape = 'u32[144,128]{1,0:T(1,128)}', space=vmem, size = 0x12000, scoped, tag = 'internal scratch']
  #allocation2 [shape = 'f32[16,32]{1,0:T(8,128)}', space=vmem, size = 0x2000, scoped, tag = 'scratch operand']
  %s0 = inlined_call_operand.vmem [shape: f32[2,8,32], index: 0, kind: input, shape index: {}]
  %s1 = inlined_call_operand.vmem [shape: f32[32,96], index: 1, kind: input, shape index: {}]
  %s2 = inlined_call_operand.vmem [shape: f32[1,96], index: 2, kind: input, shape index: {}]
  %s3 = inlined_call_operand.vmem [shape: f32[32,128], index: 3, kind: input, shape index: {}]
  %s4 = inlined_call_operand.vmem [shape: f32[1,128], index: 4, kind: input, shape index: {}]
  %s5 = inlined_call_operand.vmem [shape: f32[128,32], index: 5, kind: input, shape index: {}]
  %s6 = inlined_call_operand.vmem [shape: f32[1,32], index: 6, kind: input, shape index: {}]
  %s7 = inlined_call_operand.hbm [shape: f32[2,8,32], index: 7, kind: output, shape index: {}]
  %s8 = sld [smem:[#allocation0]]
  $region38: #{tpu_custom_call.1} parent=0
    _
  %s10 = ssub.s32 1, %s8
  %s11 = scalar_select 0, %s10, %s8
  $region1: #{tpu_custom_call.1} parent=0
    #allocation3 [shape = 'u8[8192]{0}', space=vmem, size = 0x2000, scoped, tag = 'output window, operand 0, single buffered']
    #allocation4 [shape = 's32[1]{0}', space=sflag, size = 0x4, scoped, tag = 'scoped memory for tpu_custom_call.1']
    %12 = vsyncpa [#allocation4], 0
    // Predicated region
    $region2: #{tpu_custom_call.1} parent=1 // pred_check
      _
    $region3: #{tpu_custom_call.1} parent=1 // pred_check_branch
      %14 = sbr.rel (0) target = $region5
    $region4: #{tpu_custom_call.1} parent=1 // pred_region
      _
    $region5: #{tpu_custom_call.1} parent=1 // pred_fallthru
      _
    // Predicated region
    $region6: #{tpu_custom_call.1} parent=1 // pred_check
      _
    $region7: #{tpu_custom_call.1} parent=1 // pred_check_branch
      %16 = sbr.rel (0) target = $region9
    $region8: #{tpu_custom_call.1} parent=1 // pred_region
      _
    $region9: #{tpu_custom_call.1} parent=1 // pred_fallthru
      _
    // Predicated region
    $region10: #{tpu_custom_call.1} parent=1 // pred_check
      _
    $region11: #{tpu_custom_call.1} parent=1 // pred_check_branch
      %18 = sbr.rel (0) target = $region13
    $region12: #{tpu_custom_call.1} parent=1 // pred_region
      _
    $region13: #{tpu_custom_call.1} parent=1 // pred_fallthru
      _
    // Predicated region
    $region14: #{tpu_custom_call.1} parent=1 // pred_check
      _
    $region15: #{tpu_custom_call.1} parent=1 // pred_check_branch
      %20 = sbr.rel (0) target = $region17
    $region16: #{tpu_custom_call.1} parent=1 // pred_region
      _
    $region17: #{tpu_custom_call.1} parent=1 // pred_fallthru
      _
    // Predicated region
    $region18: #{tpu_custom_call.1} parent=1 // pred_check
      _
    $region19: #{tpu_custom_call.1} parent=1 // pred_check_branch
      %22 = sbr.rel (0) target = $region21
    $region20: #{tpu_custom_call.1} parent=1 // pred_region
      _
    $region21: #{tpu_custom_call.1} parent=1 // pred_fallthru
      _
    // Predicated region
    $region22: #{tpu_custom_call.1} parent=1 // pred_check
      _
    $region23: #{tpu_custom_call.1} parent=1 // pred_check_branch
      %24 = sbr.rel (0) target = $region25
    $region24: #{tpu_custom_call.1} parent=1 // pred_region
      _
    $region25: #{tpu_custom_call.1} parent=1 // pred_fallthru
      _
    // Predicated region
    $region26: #{tpu_custom_call.1} parent=1 // pred_check
      _
    $region27: #{tpu_custom_call.1} parent=1 // pred_check_branch
      %26 = sbr.rel (0) target = $region29
    $region28: #{tpu_custom_call.1} parent=1 // pred_region
      _
    $region29: #{tpu_custom_call.1} parent=1 // pred_fallthru
      _
    %v27 = vld [vmem:[%s0] sm:$0xff]
    %v28 = vld [vmem:[%s0 + $0x8] sm:$0xff]
    %vm29 = vcmask 261120
    %v30 = vsel %vm29, %v27, 0.0
    %31 = vadd.xlane.f32.xlu0 %v30
    %v32 = vpop.xlane.xlu0 %31
    %v33 = vsel %vm29, %v28, 0.0
    %34 = vadd.xlane.f32.xlu0 %v33
    %v35 = vpop.xlane.xlu0 %34
    %v36 = vrcp.pop 32.0
    %v37 = vmul.f32 %v32, %v36
    %v38 = vmul.f32 %v35, %v36
    %v39 = vsub.f32 %v27, %v37
    %v40 = vsub.f32 %v28, %v38
    %v41 = vmul.f32 %v39, %v39
    %v42 = vmul.f32 %v40, %v40
    %v43 = vsel %vm29, %v41, 0.0
    %44 = vadd.xlane.f32.xlu0 %v43
    %v45 = vpop.xlane.xlu0 %44
    %v46 = vsel %vm29, %v42, 0.0
    %47 = vadd.xlane.f32.xlu0 %v46
    %v48 = vpop.xlane.xlu0 %47
    %v49 = vmul.f32 %v45, %v36
    %v50 = vmul.f32 %v48, %v36
    %v51 = vadd.f32 %v49, 1e-05
    %v52 = vadd.f32 %v50, 1e-05
    %v53 = vrsqrt.pop %v51
    %v54 = vrsqrt.pop %v52
    %v55 = vmul.f32 %v39, %v53
    %v56 = vmul.f32 %v40, %v54
    %v57 = vld [vmem:[%s1] sm:$0xff]
    %v58 = vld [vmem:[%s1 + $0x8] sm:$0xff]
    %v59 = vld [vmem:[%s1 + $0x10] sm:$0xff]
    %v60 = vld [vmem:[%s1 + $0x18] sm:$0xff]
    %v61 = vld [vmem:[%s2] sm:$0x1]
    %v63 = vlaneseq
    %v64 = vshrl.u32 %v63, 7
    %v65 = vsub.s32 0, %v64
    %v66 = vrot.slane %v61, %v65
    %v69 = vsel %vm29, %v55, 0
    %v72 = vsel %vm29, %v56, 0
    %74 = vmatprep.subr.mxu0 0.0
    %75 = vmatpush1.msra.mxu0 %v57
    %76 = vmatprep.subr.mxu0 0.0
    %77 = vmatpush1.msra.mxu0 %v58
    %78 = vmatprep.subr.mxu0 0.0
    %79 = vmatpush1.msra.mxu0 %v59
    %80 = vmatprep.subr.mxu0 0.0
    %81 = vmatpush1.msra.mxu0 %v60
    %82 = vmatprep.subr.mxu0 0.0
    %83 = vmatpush1.msra.mxu0 0.0
    %84 = vmatprep.subr.mxu0 0.0
    %85 = vmatpush1.msra.mxu0 0.0
    %86 = vmatprep.subr.mxu0 0.0
    %87 = vmatpush1.msra.mxu0 0.0
    %88 = vmatprep.subr.mxu0 0.0
    %89 = vmatpush1.msra.mxu0 0.0
    %90 = vmatprep.subr.mxu0 0.0
    %91 = vmatpush1.msra.mxu0 0.0
    %92 = vmatprep.subr.mxu0 0.0
    %93 = vmatpush1.msra.mxu0 0.0
    %94 = vmatprep.subr.mxu0 0.0
    %95 = vmatpush1.msra.mxu0 0.0
    %96 = vmatprep.subr.mxu0 0.0
    %97 = vmatpush1.msra.mxu0 0.0
    %98 = vmatprep.subr.mxu0 0.0
    %99 = vmatpush1.msra.mxu0 0.0
    %100 = vmatprep.subr.mxu0 0.0
    %101 = vmatpush1.msra.mxu0 0.0
    %102 = vmatprep.subr.mxu0 0.0
    %103 = vmatpush1.msra.mxu0 0.0
    %104 = vmatprep.subr.mxu0 0.0
    %105 = vmatpush1.msra.mxu0 0.0
    %106 = vmatprep.subr.mxu0 0.0
    %107 = vmatpush1.msra.mxu0 0.0
    %108 = vmatprep.subr.mxu0 0.0
    %109 = vmatpush1.msra.mxu0 0.0
    %110 = vmatprep.subr.mxu0 0.0
    %111 = vmatpush1.msra.mxu0 0.0
    %112 = vmatprep.subr.mxu0 0.0
    %113 = vmatpush1.msra.mxu0 0.0
    %114 = vmatprep.subr.mxu0 0.0
    %115 = vmatpush1.msra.mxu0 0.0
    %116 = vmatprep.subr.mxu0 0.0
    %117 = vmatpush1.msra.mxu0 0.0
    %118 = vmatprep.subr.mxu0 0.0
    %119 = vmatpush1.msra.mxu0 0.0
    %120 = vmatprep.subr.mxu0 0.0
    %121 = vmatpush1.msra.mxu0 0.0
    %122 = vmatprep.subr.mxu0 0.0
    %123 = vmatpush1.msra.mxu0 0.0
    %124 = vmatprep.subr.mxu0 0.0
    %125 = vmatpush1.msra.mxu0 0.0
    %126 = vmatprep.subr.mxu0 0.0
    %127 = vmatpush1.msra.mxu0 0.0
    %128 = vmatprep.subr.mxu0 0.0
    %129 = vmatpush1.msra.mxu0 0.0
    %130 = vmatprep.subr.mxu0 0.0
    %131 = vmatpush1.msra.mxu0 0.0
    %132 = vmatprep.subr.mxu0 0.0
    %133 = vmatpush1.msra.mxu0 0.0
    %134 = vmatprep.subr.mxu0 0.0
    %135 = vmatpush1.msra.mxu0 0.0
    %136 = vmatprep.subr.mxu0 0.0
    %137 = vmatpush1.msra.mxu0 0.0
    %138 = vmatprep.mubr.f32.mxu0 0.0
    %139 = vmatmul.mubr.f32.gmra.mrb[0].mxu0 %v69
    %v140 = vpop.f32.mrb[0].mxu0
    %v141 = vadd.f32 %v66, %v140
    %v142 = vpop.f32.mrb[0].mxu0
    %143 = vmatprep.mubr.f32.mxu0 0.0
    %144 = vmatmul.mubr.f32.gmra.mrb[0].mxu0 %v72
    %v145 = vpop.f32.mrb[0].mxu0
    %v146 = vadd.f32 %v66, %v145
    %v147 = vpop.f32.mrb[0].mxu0
    %148 = vdwg.mxu0
    %v149 = vmul.f32 %v141, 0.35355338
    %v150 = vmul.f32 %v146, 0.35355338
    %152 = vrot.lane.b32.xlu0 %v141, 96
    %v153 = vpop.permute.xlu0 %152
    %vm154 = vcmask 64512
    %v156 = vsel %vm154, %v149, 0
    %v158 = vsel %vm154, %v153, 0
    %160 = vmatprep.subr.mxu0 0.0
    %161 = vmatpush1.xpose.msra.mxu0 %v158
    %162 = vmatprep.subr.mxu0 0.0
    %163 = vmatpush1.xpose.msra.mxu0 0.0
    %164 = vmatprep.subr.mxu0 0.0
    %165 = vmatpush1.xpose.msra.mxu0 0.0
    %166 = vmatprep.subr.mxu0 0.0
    %167 = vmatpush1.xpose.msra.mxu0 0.0
    %168 = vmatprep.subr.mxu0 0.0
    %169 = vmatpush1.xpose.msra.mxu0 0.0
    %170 = vmatprep.subr.mxu0 0.0
    %171 = vmatpush1.xpose.msra.mxu0 0.0
    %172 = vmatprep.subr.mxu0 0.0
    %173 = vmatpush1.xpose.msra.mxu0 0.0
    %174 = vmatprep.subr.mxu0 0.0
    %175 = vmatpush1.xpose.msra.mxu0 0.0
    %176 = vmatprep.subr.mxu0 0.0
    %177 = vmatpush1.xpose.msra.mxu0 0.0
    %178 = vmatprep.subr.mxu0 0.0
    %179 = vmatpush1.xpose.msra.mxu0 0.0
    %180 = vmatprep.subr.mxu0 0.0
    %181 = vmatpush1.xpose.msra.mxu0 0.0
    %182 = vmatprep.subr.mxu0 0.0
    %183 = vmatpush1.xpose.msra.mxu0 0.0
    %184 = vmatprep.subr.mxu0 0.0
    %185 = vmatpush1.xpose.msra.mxu0 0.0
    %186 = vmatprep.subr.mxu0 0.0
    %187 = vmatpush1.xpose.msra.mxu0 0.0
    %188 = vmatprep.subr.mxu0 0.0
    %189 = vmatpush1.xpose.msra.mxu0 0.0
    %190 = vmatprep.subr.mxu0 0.0
    %191 = vmatpush1.xpose.msra.mxu0 0.0
    %192 = vmatprep.subr.mxu0 0.0
    %193 = vmatpush1.xpose.msra.mxu0 0.0
    %194 = vmatprep.subr.mxu0 0.0
    %195 = vmatpush1.xpose.msra.mxu0 0.0
    %196 = vmatprep.subr.mxu0 0.0
    %197 = vmatpush1.xpose.msra.mxu0 0.0
    %198 = vmatprep.subr.mxu0 0.0
    %199 = vmatpush1.xpose.msra.mxu0 0.0
    %200 = vmatprep.subr.mxu0 0.0
    %201 = vmatpush1.xpose.msra.mxu0 0.0
    %202 = vmatprep.subr.mxu0 0.0
    %203 = vmatpush1.xpose.msra.mxu0 0.0
    %204 = vmatprep.subr.mxu0 0.0
    %205 = vmatpush1.xpose.msra.mxu0 0.0
    %206 = vmatprep.subr.mxu0 0.0
    %207 = vmatpush1.xpose.msra.mxu0 0.0
    %208 = vmatprep.subr.mxu0 0.0
    %209 = vmatpush1.xpose.msra.mxu0 0.0
    %210 = vmatprep.subr.mxu0 0.0
    %211 = vmatpush1.xpose.msra.mxu0 0.0
    %212 = vmatprep.subr.mxu0 0.0
    %213 = vmatpush1.xpose.msra.mxu0 0.0
    %214 = vmatprep.subr.mxu0 0.0
    %215 = vmatpush1.xpose.msra.mxu0 0.0
    %216 = vmatprep.subr.mxu0 0.0
    %217 = vmatpush1.xpose.msra.mxu0 0.0
    %218 = vmatprep.subr.mxu0 0.0
    %219 = vmatpush1.xpose.msra.mxu0 0.0
    %220 = vmatprep.subr.mxu0 0.0
    %221 = vmatpush1.xpose.msra.mxu0 0.0
    %222 = vmatprep.subr.mxu0 0.0
    %223 = vmatpush1.xpose.msra.mxu0 0.0
    %224 = vmatprep.mubr.f32.mxu0 0.0
    %225 = vmatmul.mubr.f32.gmra.mrb[0].mxu0 %v156
    %v226 = vpop.f32.mrb[0].mxu0
    %v227 = vadd.f32 0.0, %v226
    %v228 = vpop.f32.mrb[0].mxu0
    %229 = vdwg.mxu0
    %231 = vrot.lane.b32.xlu0 %v146, 96
    %v232 = vpop.permute.xlu0 %231
    %v234 = vsel %vm154, %v150, 0
    %v236 = vsel %vm154, %v232, 0
    %238 = vmatprep.subr.mxu0 0.0
    %239 = vmatpush1.xpose.msra.mxu0 %v236
    %240 = vmatprep.subr.mxu0 0.0
    %241 = vmatpush1.xpose.msra.mxu0 0.0
    %242 = vmatprep.subr.mxu0 0.0
    %243 = vmatpush1.xpose.msra.mxu0 0.0
    %244 = vmatprep.subr.mxu0 0.0
    %245 = vmatpush1.xpose.msra.mxu0 0.0
    %246 = vmatprep.subr.mxu0 0.0
    %247 = vmatpush1.xpose.msra.mxu0 0.0
    %248 = vmatprep.subr.mxu0 0.0
    %249 = vmatpush1.xpose.msra.mxu0 0.0
    %250 = vmatprep.subr.mxu0 0.0
    %251 = vmatpush1.xpose.msra.mxu0 0.0
    %252 = vmatprep.subr.mxu0 0.0
    %253 = vmatpush1.xpose.msra.mxu0 0.0
    %254 = vmatprep.subr.mxu0 0.0
    %255 = vmatpush1.xpose.msra.mxu0 0.0
    %256 = vmatprep.subr.mxu0 0.0
    %257 = vmatpush1.xpose.msra.mxu0 0.0
    %258 = vmatprep.subr.mxu0 0.0
    %259 = vmatpush1.xpose.msra.mxu0 0.0
    %260 = vmatprep.subr.mxu0 0.0
    %261 = vmatpush1.xpose.msra.mxu0 0.0
    %262 = vmatprep.subr.mxu0 0.0
    %263 = vmatpush1.xpose.msra.mxu0 0.0
    %264 = vmatprep.subr.mxu0 0.0
    %265 = vmatpush1.xpose.msra.mxu0 0.0
    %266 = vmatprep.subr.mxu0 0.0
    %267 = vmatpush1.xpose.msra.mxu0 0.0
    %268 = vmatprep.subr.mxu0 0.0
    %269 = vmatpush1.xpose.msra.mxu0 0.0
    %270 = vmatprep.subr.mxu0 0.0
    %271 = vmatpush1.xpose.msra.mxu0 0.0
    %272 = vmatprep.subr.mxu0 0.0
    %273 = vmatpush1.xpose.msra.mxu0 0.0
    %274 = vmatprep.subr.mxu0 0.0
    %275 = vmatpush1.xpose.msra.mxu0 0.0
    %276 = vmatprep.subr.mxu0 0.0
    %277 = vmatpush1.xpose.msra.mxu0 0.0
    %278 = vmatprep.subr.mxu0 0.0
    %279 = vmatpush1.xpose.msra.mxu0 0.0
    %280 = vmatprep.subr.mxu0 0.0
    %281 = vmatpush1.xpose.msra.mxu0 0.0
    %282 = vmatprep.subr.mxu0 0.0
    %283 = vmatpush1.xpose.msra.mxu0 0.0
    %284 = vmatprep.subr.mxu0 0.0
    %285 = vmatpush1.xpose.msra.mxu0 0.0
    %286 = vmatprep.subr.mxu0 0.0
    %287 = vmatpush1.xpose.msra.mxu0 0.0
    %288 = vmatprep.subr.mxu0 0.0
    %289 = vmatpush1.xpose.msra.mxu0 0.0
    %290 = vmatprep.subr.mxu0 0.0
    %291 = vmatpush1.xpose.msra.mxu0 0.0
    %292 = vmatprep.subr.mxu0 0.0
    %293 = vmatpush1.xpose.msra.mxu0 0.0
    %294 = vmatprep.subr.mxu0 0.0
    %295 = vmatpush1.xpose.msra.mxu0 0.0
    %296 = vmatprep.subr.mxu0 0.0
    %297 = vmatpush1.xpose.msra.mxu0 0.0
    %298 = vmatprep.subr.mxu0 0.0
    %299 = vmatpush1.xpose.msra.mxu0 0.0
    %300 = vmatprep.subr.mxu0 0.0
    %301 = vmatpush1.xpose.msra.mxu0 0.0
    %302 = vmatprep.mubr.f32.mxu0 0.0
    %303 = vmatmul.mubr.f32.gmra.mrb[0].mxu0 %v234
    %v304 = vpop.f32.mrb[0].mxu0
    %v305 = vadd.f32 0.0, %v304
    %v306 = vpop.f32.mrb[0].mxu0
    %307 = vdwg.mxu0
    %v308 = vsel %vm154, %v227, -inf
    %309 = vmax.xlane.f32.xlu0 %v308
    %v310 = vpop.xlane.xlu0 %309
    %v311 = vsel %vm154, %v305, -inf
    %312 = vmax.xlane.f32.xlu0 %v311
    %v313 = vpop.xlane.xlu0 %312
    %v314 = vsub.f32 %v227, %v310
    %v315 = vsub.f32 %v305, %v313
    %v316 = vmul.f32 %v314, 1.442695
    %v317 = vpow.pop %v316
    %v318 = vmul.f32 %v315, 1.442695
    %v319 = vpow.pop %v318
    %v320 = vsel %vm154, %v317, 0.0
    %321 = vadd.xlane.f32.xlu0 %v320
    %v322 = vpop.xlane.xlu0 %321
    %v323 = vsel %vm154, %v319, 0.0
    %324 = vadd.xlane.f32.xlu0 %v323
    %v325 = vpop.xlane.xlu0 %324
    %v326 = vrcp.pop %v322
    %v327 = vrcp.pop %v325
    %v328 = vmul.f32 %v317, %v326
    %v329 = vmul.f32 %v319, %v327
    %330 = vrot.lane.b32.xlu0 %v141, 64
    %v331 = vpop.permute.xlu0 %330
    %v334 = vsel %vm154, %v328, 0
    %336 = vmatprep.subr.mxu0 0.0
    %337 = vmatpush1.msra.mxu0 %v331
    %338 = vmatprep.subr.mxu0 0.0
    %339 = vmatpush1.msra.mxu0 0.0
    %340 = vmatprep.subr.mxu0 0.0
    %341 = vmatpush1.msra.mxu0 0.0
    %342 = vmatprep.subr.mxu0 0.0
    %343 = vmatpush1.msra.mxu0 0.0
    %344 = vmatprep.subr.mxu0 0.0
    %345 = vmatpush1.msra.mxu0 0.0
    %346 = vmatprep.subr.mxu0 0.0
    %347 = vmatpush1.msra.mxu0 0.0
    %348 = vmatprep.subr.mxu0 0.0
    %349 = vmatpush1.msra.mxu0 0.0
    %350 = vmatprep.subr.mxu0 0.0
    %351 = vmatpush1.msra.mxu0 0.0
    %352 = vmatprep.subr.mxu0 0.0
    %353 = vmatpush1.msra.mxu0 0.0
    %354 = vmatprep.subr.mxu0 0.0
    %355 = vmatpush1.msra.mxu0 0.0
    %356 = vmatprep.subr.mxu0 0.0
    %357 = vmatpush1.msra.mxu0 0.0
    %358 = vmatprep.subr.mxu0 0.0
    %359 = vmatpush1.msra.mxu0 0.0
    %360 = vmatprep.subr.mxu0 0.0
    %361 = vmatpush1.msra.mxu0 0.0
    %362 = vmatprep.subr.mxu0 0.0
    %363 = vmatpush1.msra.mxu0 0.0
    %364 = vmatprep.subr.mxu0 0.0
    %365 = vmatpush1.msra.mxu0 0.0
    %366 = vmatprep.subr.mxu0 0.0
    %367 = vmatpush1.msra.mxu0 0.0
    %368 = vmatprep.subr.mxu0 0.0
    %369 = vmatpush1.msra.mxu0 0.0
    %370 = vmatprep.subr.mxu0 0.0
    %371 = vmatpush1.msra.mxu0 0.0
    %372 = vmatprep.subr.mxu0 0.0
    %373 = vmatpush1.msra.mxu0 0.0
    %374 = vmatprep.subr.mxu0 0.0
    %375 = vmatpush1.msra.mxu0 0.0
    %376 = vmatprep.subr.mxu0 0.0
    %377 = vmatpush1.msra.mxu0 0.0
    %378 = vmatprep.subr.mxu0 0.0
    %379 = vmatpush1.msra.mxu0 0.0
    %380 = vmatprep.subr.mxu0 0.0
    %381 = vmatpush1.msra.mxu0 0.0
    %382 = vmatprep.subr.mxu0 0.0
    %383 = vmatpush1.msra.mxu0 0.0
    %384 = vmatprep.subr.mxu0 0.0
    %385 = vmatpush1.msra.mxu0 0.0
    %386 = vmatprep.subr.mxu0 0.0
    %387 = vmatpush1.msra.mxu0 0.0
    %388 = vmatprep.subr.mxu0 0.0
    %389 = vmatpush1.msra.mxu0 0.0
    %390 = vmatprep.subr.mxu0 0.0
    %391 = vmatpush1.msra.mxu0 0.0
    %392 = vmatprep.subr.mxu0 0.0
    %393 = vmatpush1.msra.mxu0 0.0
    %394 = vmatprep.subr.mxu0 0.0
    %395 = vmatpush1.msra.mxu0 0.0
    %396 = vmatprep.subr.mxu0 0.0
    %397 = vmatpush1.msra.mxu0 0.0
    %398 = vmatprep.subr.mxu0 0.0
    %399 = vmatpush1.msra.mxu0 0.0
    %400 = vmatprep.mubr.f32.mxu0 0.0
    %401 = vmatmul.mubr.f32.gmra.mrb[0].mxu0 %v334
    %v402 = vpop.f32.mrb[0].mxu0
    %v403 = vadd.f32 0.0, %v402
    %v404 = vpop.f32.mrb[0].mxu0
    %405 = vdwg.mxu0
    %406 = vrot.lane.b32.xlu0 %v146, 64
    %v407 = vpop.permute.xlu0 %406
    %v410 = vsel %vm154, %v329, 0
    %412 = vmatprep.subr.mxu0 0.0
    %413 = vmatpush1.msra.mxu0 %v407
    %414 = vmatprep.subr.mxu0 0.0
    %415 = vmatpush1.msra.mxu0 0.0
    %416 = vmatprep.subr.mxu0 0.0
    %417 = vmatpush1.msra.mxu0 0.0
    %418 = vmatprep.subr.mxu0 0.0
    %419 = vmatpush1.msra.mxu0 0.0
    %420 = vmatprep.subr.mxu0 0.0
    %421 = vmatpush1.msra.mxu0 0.0
    %422 = vmatprep.subr.mxu0 0.0
    %423 = vmatpush1.msra.mxu0 0.0
    %424 = vmatprep.subr.mxu0 0.0
    %425 = vmatpush1.msra.mxu0 0.0
    %426 = vmatprep.subr.mxu0 0.0
    %427 = vmatpush1.msra.mxu0 0.0
    %428 = vmatprep.subr.mxu0 0.0
    %429 = vmatpush1.msra.mxu0 0.0
    %430 = vmatprep.subr.mxu0 0.0
    %431 = vmatpush1.msra.mxu0 0.0
    %432 = vmatprep.subr.mxu0 0.0
    %433 = vmatpush1.msra.mxu0 0.0
    %434 = vmatprep.subr.mxu0 0.0
    %435 = vmatpush1.msra.mxu0 0.0
    %436 = vmatprep.subr.mxu0 0.0
    %437 = vmatpush1.msra.mxu0 0.0
    %438 = vmatprep.subr.mxu0 0.0
    %439 = vmatpush1.msra.mxu0 0.0
    %440 = vmatprep.subr.mxu0 0.0
    %441 = vmatpush1.msra.mxu0 0.0
    %442 = vmatprep.subr.mxu0 0.0
    %443 = vmatpush1.msra.mxu0 0.0
    %444 = vmatprep.subr.mxu0 0.0
    %445 = vmatpush1.msra.mxu0 0.0
    %446 = vmatprep.subr.mxu0 0.0
    %447 = vmatpush1.msra.mxu0 0.0
    %448 = vmatprep.subr.mxu0 0.0
    %449 = vmatpush1.msra.mxu0 0.0
    %450 = vmatprep.subr.mxu0 0.0
    %451 = vmatpush1.msra.mxu0 0.0
    %452 = vmatprep.subr.mxu0 0.0
    %453 = vmatpush1.msra.mxu0 0.0
    %454 = vmatprep.subr.mxu0 0.0
    %455 = vmatpush1.msra.mxu0 0.0
    %456 = vmatprep.subr.mxu0 0.0
    %457 = vmatpush1.msra.mxu0 0.0
    %458 = vmatprep.subr.mxu0 0.0
    %459 = vmatpush1.msra.mxu0 0.0
    %460 = vmatprep.subr.mxu0 0.0
    %461 = vmatpush1.msra.mxu0 0.0
    %462 = vmatprep.subr.mxu0 0.0
    %463 = vmatpush1.msra.mxu0 0.0
    %464 = vmatprep.subr.mxu0 0.0
    %465 = vmatpush1.msra.mxu0 0.0
    %466 = vmatprep.subr.mxu0 0.0
    %467 = vmatpush1.msra.mxu0 0.0
    %468 = vmatprep.subr.mxu0 0.0
    %469 = vmatpush1.msra.mxu0 0.0
    %470 = vmatprep.subr.mxu0 0.0
    %471 = vmatpush1.msra.mxu0 0.0
    %472 = vmatprep.subr.mxu0 0.0
    %473 = vmatpush1.msra.mxu0 0.0
    %474 = vmatprep.subr.mxu0 0.0
    %475 = vmatpush1.msra.mxu0 0.0
    %476 = vmatprep.mubr.f32.mxu0 0.0
    %477 = vmatmul.mubr.f32.gmra.mrb[0].mxu0 %v410
    %v478 = vpop.f32.mrb[0].mxu0
    %v479 = vadd.f32 0.0, %v478
    %v480 = vpop.f32.mrb[0].mxu0
    %481 = vdwg.mxu0
    %482 = vst.msk [vmem:[#allocation2] sm:$0xff] %vm154, %v403
    %483 = vst.msk [vmem:[#allocation2 + $0x8] sm:$0xff] %vm154, %v479
    %484 = vrot.lane.b32.xlu0 %v149, 120
    %v485 = vpop.permute.xlu0 %484
    %486 = vrot.lane.b32.xlu0 %v141, 88
    %v487 = vpop.permute.xlu0 %486
    %v488 = vsel %vm154, %v485, 0
    %v490 = vsel %vm154, %v487, 0
    %492 = vmatprep.subr.mxu0 0.0
    %493 = vmatpush1.xpose.msra.mxu0 %v490
    %494 = vmatprep.subr.mxu0 0.0
    %495 = vmatpush1.xpose.msra.mxu0 0.0
    %496 = vmatprep.subr.mxu0 0.0
    %497 = vmatpush1.xpose.msra.mxu0 0.0
    %498 = vmatprep.subr.mxu0 0.0
    %499 = vmatpush1.xpose.msra.mxu0 0.0
    %500 = vmatprep.subr.mxu0 0.0
    %501 = vmatpush1.xpose.msra.mxu0 0.0
    %502 = vmatprep.subr.mxu0 0.0
    %503 = vmatpush1.xpose.msra.mxu0 0.0
    %504 = vmatprep.subr.mxu0 0.0
    %505 = vmatpush1.xpose.msra.mxu0 0.0
    %506 = vmatprep.subr.mxu0 0.0
    %507 = vmatpush1.xpose.msra.mxu0 0.0
    %508 = vmatprep.subr.mxu0 0.0
    %509 = vmatpush1.xpose.msra.mxu0 0.0
    %510 = vmatprep.subr.mxu0 0.0
    %511 = vmatpush1.xpose.msra.mxu0 0.0
    %512 = vmatprep.subr.mxu0 0.0
    %513 = vmatpush1.xpose.msra.mxu0 0.0
    %514 = vmatprep.subr.mxu0 0.0
    %515 = vmatpush1.xpose.msra.mxu0 0.0
    %516 = vmatprep.subr.mxu0 0.0
    %517 = vmatpush1.xpose.msra.mxu0 0.0
    %518 = vmatprep.subr.mxu0 0.0
    %519 = vmatpush1.xpose.msra.mxu0 0.0
    %520 = vmatprep.subr.mxu0 0.0
    %521 = vmatpush1.xpose.msra.mxu0 0.0
    %522 = vmatprep.subr.mxu0 0.0
    %523 = vmatpush1.xpose.msra.mxu0 0.0
    %524 = vmatprep.subr.mxu0 0.0
    %525 = vmatpush1.xpose.msra.mxu0 0.0
    %526 = vmatprep.subr.mxu0 0.0
    %527 = vmatpush1.xpose.msra.mxu0 0.0
    %528 = vmatprep.subr.mxu0 0.0
    %529 = vmatpush1.xpose.msra.mxu0 0.0
    %530 = vmatprep.subr.mxu0 0.0
    %531 = vmatpush1.xpose.msra.mxu0 0.0
    %532 = vmatprep.subr.mxu0 0.0
    %533 = vmatpush1.xpose.msra.mxu0 0.0
    %534 = vmatprep.subr.mxu0 0.0
    %535 = vmatpush1.xpose.msra.mxu0 0.0
    %536 = vmatprep.subr.mxu0 0.0
    %537 = vmatpush1.xpose.msra.mxu0 0.0
    %538 = vmatprep.subr.mxu0 0.0
    %539 = vmatpush1.xpose.msra.mxu0 0.0
    %540 = vmatprep.subr.mxu0 0.0
    %541 = vmatpush1.xpose.msra.mxu0 0.0
    %542 = vmatprep.subr.mxu0 0.0
    %543 = vmatpush1.xpose.msra.mxu0 0.0
    %544 = vmatprep.subr.mxu0 0.0
    %545 = vmatpush1.xpose.msra.mxu0 0.0
    %546 = vmatprep.subr.mxu0 0.0
    %547 = vmatpush1.xpose.msra.mxu0 0.0
    %548 = vmatprep.subr.mxu0 0.0
    %549 = vmatpush1.xpose.msra.mxu0 0.0
    %550 = vmatprep.subr.mxu0 0.0
    %551 = vmatpush1.xpose.msra.mxu0 0.0
    %552 = vmatprep.subr.mxu0 0.0
    %553 = vmatpush1.xpose.msra.mxu0 0.0
    %554 = vmatprep.subr.mxu0 0.0
    %555 = vmatpush1.xpose.msra.mxu0 0.0
    %556 = vmatprep.mubr.f32.mxu0 0.0
    %557 = vmatmul.mubr.f32.gmra.mrb[0].mxu0 %v488
    %v558 = vpop.f32.mrb[0].mxu0
    %v559 = vadd.f32 0.0, %v558
    %v560 = vpop.f32.mrb[0].mxu0
    %561 = vdwg.mxu0
    %562 = vrot.lane.b32.xlu0 %v150, 120
    %v563 = vpop.permute.xlu0 %562
    %564 = vrot.lane.b32.xlu0 %v146, 88
    %v565 = vpop.permute.xlu0 %564
    %v566 = vsel %vm154, %v563, 0
    %v568 = vsel %vm154, %v565, 0
    %570 = vmatprep.subr.mxu0 0.0
    %571 = vmatpush1.xpose.msra.mxu0 %v568
    %572 = vmatprep.subr.mxu0 0.0
    %573 = vmatpush1.xpose.msra.mxu0 0.0
    %574 = vmatprep.subr.mxu0 0.0
    %575 = vmatpush1.xpose.msra.mxu0 0.0
    %576 = vmatprep.subr.mxu0 0.0
    %577 = vmatpush1.xpose.msra.mxu0 0.0
    %578 = vmatprep.subr.mxu0 0.0
    %579 = vmatpush1.xpose.msra.mxu0 0.0
    %580 = vmatprep.subr.mxu0 0.0
    %581 = vmatpush1.xpose.msra.mxu0 0.0
    %582 = vmatprep.subr.mxu0 0.0
    %583 = vmatpush1.xpose.msra.mxu0 0.0
    %584 = vmatprep.subr.mxu0 0.0
    %585 = vmatpush1.xpose.msra.mxu0 0.0
    %586 = vmatprep.subr.mxu0 0.0
    %587 = vmatpush1.xpose.msra.mxu0 0.0
    %588 = vmatprep.subr.mxu0 0.0
    %589 = vmatpush1.xpose.msra.mxu0 0.0
    %590 = vmatprep.subr.mxu0 0.0
    %591 = vmatpush1.xpose.msra.mxu0 0.0
    %592 = vmatprep.subr.mxu0 0.0
    %593 = vmatpush1.xpose.msra.mxu0 0.0
    %594 = vmatprep.subr.mxu0 0.0
    %595 = vmatpush1.xpose.msra.mxu0 0.0
    %596 = vmatprep.subr.mxu0 0.0
    %597 = vmatpush1.xpose.msra.mxu0 0.0
    %598 = vmatprep.subr.mxu0 0.0
    %599 = vmatpush1.xpose.msra.mxu0 0.0
    %600 = vmatprep.subr.mxu0 0.0
    %601 = vmatpush1.xpose.msra.mxu0 0.0
    %602 = vmatprep.subr.mxu0 0.0
    %603 = vmatpush1.xpose.msra.mxu0 0.0
    %604 = vmatprep.subr.mxu0 0.0
    %605 = vmatpush1.xpose.msra.mxu0 0.0
    %606 = vmatprep.subr.mxu0 0.0
    %607 = vmatpush1.xpose.msra.mxu0 0.0
    %608 = vmatprep.subr.mxu0 0.0
    %609 = vmatpush1.xpose.msra.mxu0 0.0
    %610 = vmatprep.subr.mxu0 0.0
    %611 = vmatpush1.xpose.msra.mxu0 0.0
    %612 = vmatprep.subr.mxu0 0.0
    %613 = vmatpush1.xpose.msra.mxu0 0.0
    %614 = vmatprep.subr.mxu0 0.0
    %615 = vmatpush1.xpose.msra.mxu0 0.0
    %616 = vmatprep.subr.mxu0 0.0
    %617 = vmatpush1.xpose.msra.mxu0 0.0
    %618 = vmatprep.subr.mxu0 0.0
    %619 = vmatpush1.xpose.msra.mxu0 0.0
    %620 = vmatprep.subr.mxu0 0.0
    %621 = vmatpush1.xpose.msra.mxu0 0.0
    %622 = vmatprep.subr.mxu0 0.0
    %623 = vmatpush1.xpose.msra.mxu0 0.0
    %624 = vmatprep.subr.mxu0 0.0
    %625 = vmatpush1.xpose.msra.mxu0 0.0
    %626 = vmatprep.subr.mxu0 0.0
    %627 = vmatpush1.xpose.msra.mxu0 0.0
    %628 = vmatprep.subr.mxu0 0.0
    %629 = vmatpush1.xpose.msra.mxu0 0.0
    %630 = vmatprep.subr.mxu0 0.0
    %631 = vmatpush1.xpose.msra.mxu0 0.0
    %632 = vmatprep.subr.mxu0 0.0
    %633 = vmatpush1.xpose.msra.mxu0 0.0
    %634 = vmatprep.mubr.f32.mxu0 0.0
    %635 = vmatmul.mubr.f32.gmra.mrb[0].mxu0 %v566
    %v636 = vpop.f32.mrb[0].mxu0
    %v637 = vadd.f32 0.0, %v636
    %v638 = vpop.f32.mrb[0].mxu0
    %639 = vdwg.mxu0
    %v640 = vsel %vm154, %v559, -inf
    %641 = vmax.xlane.f32.xlu0 %v640
    %v642 = vpop.xlane.xlu0 %641
    %v643 = vsel %vm154, %v637, -inf
    %644 = vmax.xlane.f32.xlu0 %v643
    %v645 = vpop.xlane.xlu0 %644
    %v646 = vsub.f32 %v559, %v642
    %v647 = vsub.f32 %v637, %v645
    %v648 = vmul.f32 %v646, 1.442695
    %v649 = vpow.pop %v648
    %v650 = vmul.f32 %v647, 1.442695
    %v651 = vpow.pop %v650
    %v652 = vsel %vm154, %v649, 0.0
    %653 = vadd.xlane.f32.xlu0 %v652
    %v654 = vpop.xlane.xlu0 %653
    %v655 = vsel %vm154, %v651, 0.0
    %656 = vadd.xlane.f32.xlu0 %v655
    %v657 = vpop.xlane.xlu0 %656
    %v658 = vrcp.pop %v654
    %v659 = vrcp.pop %v657
    %v660 = vmul.f32 %v649, %v658
    %v661 = vmul.f32 %v651, %v659
    %662 = vrot.lane.b32.xlu0 %v141, 56
    %v663 = vpop.permute.xlu0 %662
    %v666 = vsel %vm154, %v660, 0
    %668 = vmatprep.subr.mxu0 0.0
    %669 = vmatpush1.msra.mxu0 %v663
    %670 = vmatprep.subr.mxu0 0.0
    %671 = vmatpush1.msra.mxu0 0.0
    %672 = vmatprep.subr.mxu0 0.0
    %673 = vmatpush1.msra.mxu0 0.0
    %674 = vmatprep.subr.mxu0 0.0
    %675 = vmatpush1.msra.mxu0 0.0
    %676 = vmatprep.subr.mxu0 0.0
    %677 = vmatpush1.msra.mxu0 0.0
    %678 = vmatprep.subr.mxu0 0.0
    %679 = vmatpush1.msra.mxu0 0.0
    %680 = vmatprep.subr.mxu0 0.0
    %681 = vmatpush1.msra.mxu0 0.0
    %682 = vmatprep.subr.mxu0 0.0
    %683 = vmatpush1.msra.mxu0 0.0
    %684 = vmatprep.subr.mxu0 0.0
    %685 = vmatpush1.msra.mxu0 0.0
    %686 = vmatprep.subr.mxu0 0.0
    %687 = vmatpush1.msra.mxu0 0.0
    %688 = vmatprep.subr.mxu0 0.0
    %689 = vmatpush1.msra.mxu0 0.0
    %690 = vmatprep.subr.mxu0 0.0
    %691 = vmatpush1.msra.mxu0 0.0
    %692 = vmatprep.subr.mxu0 0.0
    %693 = vmatpush1.msra.mxu0 0.0
    %694 = vmatprep.subr.mxu0 0.0
    %695 = vmatpush1.msra.mxu0 0.0
    %696 = vmatprep.subr.mxu0 0.0
    %697 = vmatpush1.msra.mxu0 0.0
    %698 = vmatprep.subr.mxu0 0.0
    %699 = vmatpush1.msra.mxu0 0.0
    %700 = vmatprep.subr.mxu0 0.0
    %701 = vmatpush1.msra.mxu0 0.0
    %702 = vmatprep.subr.mxu0 0.0
    %703 = vmatpush1.msra.mxu0 0.0
    %704 = vmatprep.subr.mxu0 0.0
    %705 = vmatpush1.msra.mxu0 0.0
    %706 = vmatprep.subr.mxu0 0.0
    %707 = vmatpush1.msra.mxu0 0.0
    %708 = vmatprep.subr.mxu0 0.0
    %709 = vmatpush1.msra.mxu0 0.0
    %710 = vmatprep.subr.mxu0 0.0
    %711 = vmatpush1.msra.mxu0 0.0
    %712 = vmatprep.subr.mxu0 0.0
    %713 = vmatpush1.msra.mxu0 0.0
    %714 = vmatprep.subr.mxu0 0.0
    %715 = vmatpush1.msra.mxu0 0.0
    %716 = vmatprep.subr.mxu0 0.0
    %717 = vmatpush1.msra.mxu0 0.0
    %718 = vmatprep.subr.mxu0 0.0
    %719 = vmatpush1.msra.mxu0 0.0
    %720 = vmatprep.subr.mxu0 0.0
    %721 = vmatpush1.msra.mxu0 0.0
    %722 = vmatprep.subr.mxu0 0.0
    %723 = vmatpush1.msra.mxu0 0.0
    %724 = vmatprep.subr.mxu0 0.0
    %725 = vmatpush1.msra.mxu0 0.0
    %726 = vmatprep.subr.mxu0 0.0
    %727 = vmatpush1.msra.mxu0 0.0
    %728 = vmatprep.subr.mxu0 0.0
    %729 = vmatpush1.msra.mxu0 0.0
    %730 = vmatprep.subr.mxu0 0.0
    %731 = vmatpush1.msra.mxu0 0.0
    %732 = vmatprep.mubr.f32.mxu0 0.0
    %733 = vmatmul.mubr.f32.gmra.mrb[0].mxu0 %v666
    %v734 = vpop.f32.mrb[0].mxu0
    %v735 = vadd.f32 0.0, %v734
    %v736 = vpop.f32.mrb[0].mxu0
    %737 = vdwg.mxu0
    %738 = vrot.lane.b32.xlu0 %v146, 56
    %v739 = vpop.permute.xlu0 %738
    %v742 = vsel %vm154, %v661, 0
    %744 = vmatprep.subr.mxu0 0.0
    %745 = vmatpush1.msra.mxu0 %v739
    %746 = vmatprep.subr.mxu0 0.0
    %747 = vmatpush1.msra.mxu0 0.0
    %748 = vmatprep.subr.mxu0 0.0
    %749 = vmatpush1.msra.mxu0 0.0
    %750 = vmatprep.subr.mxu0 0.0
    %751 = vmatpush1.msra.mxu0 0.0
    %752 = vmatprep.subr.mxu0 0.0
    %753 = vmatpush1.msra.mxu0 0.0
    %754 = vmatprep.subr.mxu0 0.0
    %755 = vmatpush1.msra.mxu0 0.0
    %756 = vmatprep.subr.mxu0 0.0
    %757 = vmatpush1.msra.mxu0 0.0
    %758 = vmatprep.subr.mxu0 0.0
    %759 = vmatpush1.msra.mxu0 0.0
    %760 = vmatprep.subr.mxu0 0.0
    %761 = vmatpush1.msra.mxu0 0.0
    %762 = vmatprep.subr.mxu0 0.0
    %763 = vmatpush1.msra.mxu0 0.0
    %764 = vmatprep.subr.mxu0 0.0
    %765 = vmatpush1.msra.mxu0 0.0
    %766 = vmatprep.subr.mxu0 0.0
    %767 = vmatpush1.msra.mxu0 0.0
    %768 = vmatprep.subr.mxu0 0.0
    %769 = vmatpush1.msra.mxu0 0.0
    %770 = vmatprep.subr.mxu0 0.0
    %771 = vmatpush1.msra.mxu0 0.0
    %772 = vmatprep.subr.mxu0 0.0
    %773 = vmatpush1.msra.mxu0 0.0
    %774 = vmatprep.subr.mxu0 0.0
    %775 = vmatpush1.msra.mxu0 0.0
    %776 = vmatprep.subr.mxu0 0.0
    %777 = vmatpush1.msra.mxu0 0.0
    %778 = vmatprep.subr.mxu0 0.0
    %779 = vmatpush1.msra.mxu0 0.0
    %780 = vmatprep.subr.mxu0 0.0
    %781 = vmatpush1.msra.mxu0 0.0
    %782 = vmatprep.subr.mxu0 0.0
    %783 = vmatpush1.msra.mxu0 0.0
    %784 = vmatprep.subr.mxu0 0.0
    %785 = vmatpush1.msra.mxu0 0.0
    %786 = vmatprep.subr.mxu0 0.0
    %787 = vmatpush1.msra.mxu0 0.0
    %788 = vmatprep.subr.mxu0 0.0
    %789 = vmatpush1.msra.mxu0 0.0
    %790 = vmatprep.subr.mxu0 0.0
    %791 = vmatpush1.msra.mxu0 0.0
    %792 = vmatprep.subr.mxu0 0.0
    %793 = vmatpush1.msra.mxu0 0.0
    %794 = vmatprep.subr.mxu0 0.0
    %795 = vmatpush1.msra.mxu0 0.0
    %796 = vmatprep.subr.mxu0 0.0
    %797 = vmatpush1.msra.mxu0 0.0
    %798 = vmatprep.subr.mxu0 0.0
    %799 = vmatpush1.msra.mxu0 0.0
    %800 = vmatprep.subr.mxu0 0.0
    %801 = vmatpush1.msra.mxu0 0.0
    %802 = vmatprep.subr.mxu0 0.0
    %803 = vmatpush1.msra.mxu0 0.0
    %804 = vmatprep.subr.mxu0 0.0
    %805 = vmatpush1.msra.mxu0 0.0
    %806 = vmatprep.subr.mxu0 0.0
    %807 = vmatpush1.msra.mxu0 0.0
    %808 = vmatprep.mubr.f32.mxu0 0.0
    %809 = vmatmul.mubr.f32.gmra.mrb[0].mxu0 %v742
    %v810 = vpop.f32.mrb[0].mxu0
    %v811 = vadd.f32 0.0, %v810
    %v812 = vpop.f32.mrb[0].mxu0
    %813 = vdwg.mxu0
    %816 = vrot.lane.b32.xlu0 %v735, 8
    %v817 = vpop.permute.xlu0 %816
    %818 = vrot.lane.b32.xlu0 %v811, 8
    %v819 = vpop.permute.xlu0 %818
    %vm822 = vcmask 130112
    %823 = vst.msk [vmem:[#allocation2] sm:$0xff] %vm822, %v817
    %824 = vst.msk [vmem:[#allocation2 + $0x8] sm:$0xff] %vm822, %v819
    %825 = vrot.lane.b32.xlu0 %v149, 112
    %v826 = vpop.permute.xlu0 %825
    %827 = vrot.lane.b32.xlu0 %v141, 80
    %v828 = vpop.permute.xlu0 %827
    %v829 = vsel %vm154, %v826, 0
    %v831 = vsel %vm154, %v828, 0
    %833 = vmatprep.subr.mxu0 0.0
    %834 = vmatpush1.xpose.msra.mxu0 %v831
    %835 = vmatprep.subr.mxu0 0.0
    %836 = vmatpush1.xpose.msra.mxu0 0.0
    %837 = vmatprep.subr.mxu0 0.0
    %838 = vmatpush1.xpose.msra.mxu0 0.0
    %839 = vmatprep.subr.mxu0 0.0
    %840 = vmatpush1.xpose.msra.mxu0 0.0
    %841 = vmatprep.subr.mxu0 0.0
    %842 = vmatpush1.xpose.msra.mxu0 0.0
    %843 = vmatprep.subr.mxu0 0.0
    %844 = vmatpush1.xpose.msra.mxu0 0.0
    %845 = vmatprep.subr.mxu0 0.0
    %846 = vmatpush1.xpose.msra.mxu0 0.0
    %847 = vmatprep.subr.mxu0 0.0
    %848 = vmatpush1.xpose.msra.mxu0 0.0
    %849 = vmatprep.subr.mxu0 0.0
    %850 = vmatpush1.xpose.msra.mxu0 0.0
    %851 = vmatprep.subr.mxu0 0.0
    %852 = vmatpush1.xpose.msra.mxu0 0.0
    %853 = vmatprep.subr.mxu0 0.0
    %854 = vmatpush1.xpose.msra.mxu0 0.0
    %855 = vmatprep.subr.mxu0 0.0
    %856 = vmatpush1.xpose.msra.mxu0 0.0
    %857 = vmatprep.subr.mxu0 0.0
    %858 = vmatpush1.xpose.msra.mxu0 0.0
    %859 = vmatprep.subr.mxu0 0.0
    %860 = vmatpush1.xpose.msra.mxu0 0.0
    %861 = vmatprep.subr.mxu0 0.0
    %862 = vmatpush1.xpose.msra.mxu0 0.0
    %863 = vmatprep.subr.mxu0 0.0
    %864 = vmatpush1.xpose.msra.mxu0 0.0
    %865 = vmatprep.subr.mxu0 0.0
    %866 = vmatpush1.xpose.msra.mxu0 0.0
    %867 = vmatprep.subr.mxu0 0.0
    %868 = vmatpush1.xpose.msra.mxu0 0.0
    %869 = vmatprep.subr.mxu0 0.0
    %870 = vmatpush1.xpose.msra.mxu0 0.0
    %871 = vmatprep.subr.mxu0 0.0
    %872 = vmatpush1.xpose.msra.mxu0 0.0
    %873 = vmatprep.subr.mxu0 0.0
    %874 = vmatpush1.xpose.msra.mxu0 0.0
    %875 = vmatprep.subr.mxu0 0.0
    %876 = vmatpush1.xpose.msra.mxu0 0.0
    %877 = vmatprep.subr.mxu0 0.0
    %878 = vmatpush1.xpose.msra.mxu0 0.0
    %879 = vmatprep.subr.mxu0 0.0
    %880 = vmatpush1.xpose.msra.mxu0 0.0
    %881 = vmatprep.subr.mxu0 0.0
    %882 = vmatpush1.xpose.msra.mxu0 0.0
    %883 = vmatprep.subr.mxu0 0.0
    %884 = vmatpush1.xpose.msra.mxu0 0.0
    %885 = vmatprep.subr.mxu0 0.0
    %886 = vmatpush1.xpose.msra.mxu0 0.0
    %887 = vmatprep.subr.mxu0 0.0
    %888 = vmatpush1.xpose.msra.mxu0 0.0
    %889 = vmatprep.subr.mxu0 0.0
    %890 = vmatpush1.xpose.msra.mxu0 0.0
    %891 = vmatprep.subr.mxu0 0.0
    %892 = vmatpush1.xpose.msra.mxu0 0.0
    %893 = vmatprep.subr.mxu0 0.0
    %894 = vmatpush1.xpose.msra.mxu0 0.0
    %895 = vmatprep.subr.mxu0 0.0
    %896 = vmatpush1.xpose.msra.mxu0 0.0
    %897 = vmatprep.mubr.f32.mxu0 0.0
    %898 = vmatmul.mubr.f32.gmra.mrb[0].mxu0 %v829
    %v899 = vpop.f32.mrb[0].mxu0
    %v900 = vadd.f32 0.0, %v899
    %v901 = vpop.f32.mrb[0].mxu0
    %902 = vdwg.mxu0
    %903 = vrot.lane.b32.xlu0 %v150, 112
    %v904 = vpop.permute.xlu0 %903
    %905 = vrot.lane.b32.xlu0 %v146, 80
    %v906 = vpop.permute.xlu0 %905
    %v907 = vsel %vm154, %v904, 0
    %v909 = vsel %vm154, %v906, 0
    %911 = vmatprep.subr.mxu0 0.0
    %912 = vmatpush1.xpose.msra.mxu0 %v909
    %913 = vmatprep.subr.mxu0 0.0
    %914 = vmatpush1.xpose.msra.mxu0 0.0
    %915 = vmatprep.subr.mxu0 0.0
    %916 = vmatpush1.xpose.msra.mxu0 0.0
    %917 = vmatprep.subr.mxu0 0.0
    %918 = vmatpush1.xpose.msra.mxu0 0.0
    %919 = vmatprep.subr.mxu0 0.0
    %920 = vmatpush1.xpose.msra.mxu0 0.0
    %921 = vmatprep.subr.mxu0 0.0
    %922 = vmatpush1.xpose.msra.mxu0 0.0
    %923 = vmatprep.subr.mxu0 0.0
    %924 = vmatpush1.xpose.msra.mxu0 0.0
    %925 = vmatprep.subr.mxu0 0.0
    %926 = vmatpush1.xpose.msra.mxu0 0.0
    %927 = vmatprep.subr.mxu0 0.0
    %928 = vmatpush1.xpose.msra.mxu0 0.0
    %929 = vmatprep.subr.mxu0 0.0
    %930 = vmatpush1.xpose.msra.mxu0 0.0
    %931 = vmatprep.subr.mxu0 0.0
    %932 = vmatpush1.xpose.msra.mxu0 0.0
    %933 = vmatprep.subr.mxu0 0.0
    %934 = vmatpush1.xpose.msra.mxu0 0.0
    %935 = vmatprep.subr.mxu0 0.0
    %936 = vmatpush1.xpose.msra.mxu0 0.0
    %937 = vmatprep.subr.mxu0 0.0
    %938 = vmatpush1.xpose.msra.mxu0 0.0
    %939 = vmatprep.subr.mxu0 0.0
    %940 = vmatpush1.xpose.msra.mxu0 0.0
    %941 = vmatprep.subr.mxu0 0.0
    %942 = vmatpush1.xpose.msra.mxu0 0.0
    %943 = vmatprep.subr.mxu0 0.0
    %944 = vmatpush1.xpose.msra.mxu0 0.0
    %945 = vmatprep.subr.mxu0 0.0
    %946 = vmatpush1.xpose.msra.mxu0 0.0
    %947 = vmatprep.subr.mxu0 0.0
    %948 = vmatpush1.xpose.msra.mxu0 0.0
    %949 = vmatprep.subr.mxu0 0.0
    %950 = vmatpush1.xpose.msra.mxu0 0.0
    %951 = vmatprep.subr.mxu0 0.0
    %952 = vmatpush1.xpose.msra.mxu0 0.0
    %953 = vmatprep.subr.mxu0 0.0
    %954 = vmatpush1.xpose.msra.mxu0 0.0
    %955 = vmatprep.subr.mxu0 0.0
    %956 = vmatpush1.xpose.msra.mxu0 0.0
    %957 = vmatprep.subr.mxu0 0.0
    %958 = vmatpush1.xpose.msra.mxu0 0.0
    %959 = vmatprep.subr.mxu0 0.0
    %960 = vmatpush1.xpose.msra.mxu0 0.0
    %961 = vmatprep.subr.mxu0 0.0
    %962 = vmatpush1.xpose.msra.mxu0 0.0
    %963 = vmatprep.subr.mxu0 0.0
    %964 = vmatpush1.xpose.msra.mxu0 0.0
    %965 = vmatprep.subr.mxu0 0.0
    %966 = vmatpush1.xpose.msra.mxu0 0.0
    %967 = vmatprep.subr.mxu0 0.0
    %968 = vmatpush1.xpose.msra.mxu0 0.0
    %969 = vmatprep.subr.mxu0 0.0
    %970 = vmatpush1.xpose.msra.mxu0 0.0
    %971 = vmatprep.subr.mxu0 0.0
    %972 = vmatpush1.xpose.msra.mxu0 0.0
    %973 = vmatprep.subr.mxu0 0.0
    %974 = vmatpush1.xpose.msra.mxu0 0.0
    %975 = vmatprep.mubr.f32.mxu0 0.0
    %976 = vmatmul.mubr.f32.gmra.mrb[0].mxu0 %v907
    %v977 = vpop.f32.mrb[0].mxu0
    %v978 = vadd.f32 0.0, %v977
    %v979 = vpop.f32.mrb[0].mxu0
    %980 = vdwg.mxu0
    %v981 = vsel %vm154, %v900, -inf
    %982 = vmax.xlane.f32.xlu0 %v981
    %v983 = vpop.xlane.xlu0 %982
    %v984 = vsel %vm154, %v978, -inf
    %985 = vmax.xlane.f32.xlu0 %v984
    %v986 = vpop.xlane.xlu0 %985
    %v987 = vsub.f32 %v900, %v983
    %v988 = vsub.f32 %v978, %v986
    %v989 = vmul.f32 %v987, 1.442695
    %v990 = vpow.pop %v989
    %v991 = vmul.f32 %v988, 1.442695
    %v992 = vpow.pop %v991
    %v993 = vsel %vm154, %v990, 0.0
    %994 = vadd.xlane.f32.xlu0 %v993
    %v995 = vpop.xlane.xlu0 %994
    %v996 = vsel %vm154, %v992, 0.0
    %997 = vadd.xlane.f32.xlu0 %v996
    %v998 = vpop.xlane.xlu0 %997
    %v999 = vrcp.pop %v995
    %v1000 = vrcp.pop %v998
    %v1001 = vmul.f32 %v990, %v999
    %v1002 = vmul.f32 %v992, %v1000
    %1003 = vrot.lane.b32.xlu0 %v141, 48
    %v1004 = vpop.permute.xlu0 %1003
    %v1007 = vsel %vm154, %v1001, 0
    %1009 = vmatprep.subr.mxu0 0.0
    %1010 = vmatpush1.msra.mxu0 %v1004
    %1011 = vmatprep.subr.mxu0 0.0
    %1012 = vmatpush1.msra.mxu0 0.0
    %1013 = vmatprep.subr.mxu0 0.0
    %1014 = vmatpush1.msra.mxu0 0.0
    %1015 = vmatprep.subr.mxu0 0.0
    %1016 = vmatpush1.msra.mxu0 0.0
    %1017 = vmatprep.subr.mxu0 0.0
    %1018 = vmatpush1.msra.mxu0 0.0
    %1019 = vmatprep.subr.mxu0 0.0
    %1020 = vmatpush1.msra.mxu0 0.0
    %1021 = vmatprep.subr.mxu0 0.0
    %1022 = vmatpush1.msra.mxu0 0.0
    %1023 = vmatprep.subr.mxu0 0.0
    %1024 = vmatpush1.msra.mxu0 0.0
    %1025 = vmatprep.subr.mxu0 0.0
    %1026 = vmatpush1.msra.mxu0 0.0
    %1027 = vmatprep.subr.mxu0 0.0
    %1028 = vmatpush1.msra.mxu0 0.0
    %1029 = vmatprep.subr.mxu0 0.0
    %1030 = vmatpush1.msra.mxu0 0.0
    %1031 = vmatprep.subr.mxu0 0.0
    %1032 = vmatpush1.msra.mxu0 0.0
    %1033 = vmatprep.subr.mxu0 0.0
    %1034 = vmatpush1.msra.mxu0 0.0
    %1035 = vmatprep.subr.mxu0 0.0
    %1036 = vmatpush1.msra.mxu0 0.0
    %1037 = vmatprep.subr.mxu0 0.0
    %1038 = vmatpush1.msra.mxu0 0.0
    %1039 = vmatprep.subr.mxu0 0.0
    %1040 = vmatpush1.msra.mxu0 0.0
    %1041 = vmatprep.subr.mxu0 0.0
    %1042 = vmatpush1.msra.mxu0 0.0
    %1043 = vmatprep.subr.mxu0 0.0
    %1044 = vmatpush1.msra.mxu0 0.0
    %1045 = vmatprep.subr.mxu0 0.0
    %1046 = vmatpush1.msra.mxu0 0.0
    %1047 = vmatprep.subr.mxu0 0.0
    %1048 = vmatpush1.msra.mxu0 0.0
    %1049 = vmatprep.subr.mxu0 0.0
    %1050 = vmatpush1.msra.mxu0 0.0
    %1051 = vmatprep.subr.mxu0 0.0
    %1052 = vmatpush1.msra.mxu0 0.0
    %1053 = vmatprep.subr.mxu0 0.0
    %1054 = vmatpush1.msra.mxu0 0.0
    %1055 = vmatprep.subr.mxu0 0.0
    %1056 = vmatpush1.msra.mxu0 0.0
    %1057 = vmatprep.subr.mxu0 0.0
    %1058 = vmatpush1.msra.mxu0 0.0
    %1059 = vmatprep.subr.mxu0 0.0
    %1060 = vmatpush1.msra.mxu0 0.0
    %1061 = vmatprep.subr.mxu0 0.0
    %1062 = vmatpush1.msra.mxu0 0.0
    %1063 = vmatprep.subr.mxu0 0.0
    %1064 = vmatpush1.msra.mxu0 0.0
    %1065 = vmatprep.subr.mxu0 0.0
    %1066 = vmatpush1.msra.mxu0 0.0
    %1067 = vmatprep.subr.mxu0 0.0
    %1068 = vmatpush1.msra.mxu0 0.0
    %1069 = vmatprep.subr.mxu0 0.0
    %1070 = vmatpush1.msra.mxu0 0.0
    %1071 = vmatprep.subr.mxu0 0.0
    %1072 = vmatpush1.msra.mxu0 0.0
    %1073 = vmatprep.mubr.f32.mxu0 0.0
    %1074 = vmatmul.mubr.f32.gmra.mrb[0].mxu0 %v1007
    %v1075 = vpop.f32.mrb[0].mxu0
    %v1076 = vadd.f32 0.0, %v1075
    %v1077 = vpop.f32.mrb[0].mxu0
    %1078 = vdwg.mxu0
    %1079 = vrot.lane.b32.xlu0 %v146, 48
    %v1080 = vpop.permute.xlu0 %1079
    %v1083 = vsel %vm154, %v1002, 0
    %1085 = vmatprep.subr.mxu0 0.0
    %1086 = vmatpush1.msra.mxu0 %v1080
    %1087 = vmatprep.subr.mxu0 0.0
    %1088 = vmatpush1.msra.mxu0 0.0
    %1089 = vmatprep.subr.mxu0 0.0
    %1090 = vmatpush1.msra.mxu0 0.0
    %1091 = vmatprep.subr.mxu0 0.0
    %1092 = vmatpush1.msra.mxu0 0.0
    %1093 = vmatprep.subr.mxu0 0.0
    %1094 = vmatpush1.msra.mxu0 0.0
    %1095 = vmatprep.subr.mxu0 0.0
    %1096 = vmatpush1.msra.mxu0 0.0
    %1097 = vmatprep.subr.mxu0 0.0
    %1098 = vmatpush1.msra.mxu0 0.0
    %1099 = vmatprep.subr.mxu0 0.0
    %1100 = vmatpush1.msra.mxu0 0.0
    %1101 = vmatprep.subr.mxu0 0.0
    %1102 = vmatpush1.msra.mxu0 0.0
    %1103 = vmatprep.subr.mxu0 0.0
    %1104 = vmatpush1.msra.mxu0 0.0
    %1105 = vmatprep.subr.mxu0 0.0
    %1106 = vmatpush1.msra.mxu0 0.0
    %1107 = vmatprep.subr.mxu0 0.0
    %1108 = vmatpush1.msra.mxu0 0.0
    %1109 = vmatprep.subr.mxu0 0.0
    %1110 = vmatpush1.msra.mxu0 0.0
    %1111 = vmatprep.subr.mxu0 0.0
    %1112 = vmatpush1.msra.mxu0 0.0
    %1113 = vmatprep.subr.mxu0 0.0
    %1114 = vmatpush1.msra.mxu0 0.0
    %1115 = vmatprep.subr.mxu0 0.0
    %1116 = vmatpush1.msra.mxu0 0.0
    %1117 = vmatprep.subr.mxu0 0.0
    %1118 = vmatpush1.msra.mxu0 0.0
    %1119 = vmatprep.subr.mxu0 0.0
    %1120 = vmatpush1.msra.mxu0 0.0
    %1121 = vmatprep.subr.mxu0 0.0
    %1122 = vmatpush1.msra.mxu0 0.0
    %1123 = vmatprep.subr.mxu0 0.0
    %1124 = vmatpush1.msra.mxu0 0.0
    %1125 = vmatprep.subr.mxu0 0.0
    %1126 = vmatpush1.msra.mxu0 0.0
    %1127 = vmatprep.subr.mxu0 0.0
    %1128 = vmatpush1.msra.mxu0 0.0
    %1129 = vmatprep.subr.mxu0 0.0
    %1130 = vmatpush1.msra.mxu0 0.0
    %1131 = vmatprep.subr.mxu0 0.0
    %1132 = vmatpush1.msra.mxu0 0.0
    %1133 = vmatprep.subr.mxu0 0.0
    %1134 = vmatpush1.msra.mxu0 0.0
    %1135 = vmatprep.subr.mxu0 0.0
    %1136 = vmatpush1.msra.mxu0 0.0
    %1137 = vmatprep.subr.mxu0 0.0
    %1138 = vmatpush1.msra.mxu0 0.0
    %1139 = vmatprep.subr.mxu0 0.0
    %1140 = vmatpush1.msra.mxu0 0.0
    %1141 = vmatprep.subr.mxu0 0.0
    %1142 = vmatpush1.msra.mxu0 0.0
    %1143 = vmatprep.subr.mxu0 0.0
    %1144 = vmatpush1.msra.mxu0 0.0
    %1145 = vmatprep.subr.mxu0 0.0
    %1146 = vmatpush1.msra.mxu0 0.0
    %1147 = vmatprep.subr.mxu0 0.0
    %1148 = vmatpush1.msra.mxu0 0.0
    %1149 = vmatprep.mubr.f32.mxu0 0.0
    %1150 = vmatmul.mubr.f32.gmra.mrb[0].mxu0 %v1083
    %v1151 = vpop.f32.mrb[0].mxu0
    %v1152 = vadd.f32 0.0, %v1151
    %v1153 = vpop.f32.mrb[0].mxu0
    %1154 = vdwg.mxu0
    %1157 = vrot.lane.b32.xlu0 %v1076, 16
    %v1158 = vpop.permute.xlu0 %1157
    %1159 = vrot.lane.b32.xlu0 %v1152, 16
    %v1160 = vpop.permute.xlu0 %1159
    %vm1163 = vcmask 195712
    %1164 = vst.msk [vmem:[#allocation2] sm:$0xff] %vm1163, %v1158
    %1165 = vst.msk [vmem:[#allocation2 + $0x8] sm:$0xff] %vm1163, %v1160
    %1166 = vrot.lane.b32.xlu0 %v149, 104
    %v1167 = vpop.permute.xlu0 %1166
    %1168 = vrot.lane.b32.xlu0 %v141, 72
    %v1169 = vpop.permute.xlu0 %1168
    %v1170 = vsel %vm154, %v1167, 0
    %v1172 = vsel %vm154, %v1169, 0
    %1174 = vmatprep.subr.mxu0 0.0
    %1175 = vmatpush1.xpose.msra.mxu0 %v1172
    %1176 = vmatprep.subr.mxu0 0.0
    %1177 = vmatpush1.xpose.msra.mxu0 0.0
    %1178 = vmatprep.subr.mxu0 0.0
    %1179 = vmatpush1.xpose.msra.mxu0 0.0
    %1180 = vmatprep.subr.mxu0 0.0
    %1181 = vmatpush1.xpose.msra.mxu0 0.0
    %1182 = vmatprep.subr.mxu0 0.0
    %1183 = vmatpush1.xpose.msra.mxu0 0.0
    %1184 = vmatprep.subr.mxu0 0.0
    %1185 = vmatpush1.xpose.msra.mxu0 0.0
    %1186 = vmatprep.subr.mxu0 0.0
    %1187 = vmatpush1.xpose.msra.mxu0 0.0
    %1188 = vmatprep.subr.mxu0 0.0
    %1189 = vmatpush1.xpose.msra.mxu0 0.0
    %1190 = vmatprep.subr.mxu0 0.0
    %1191 = vmatpush1.xpose.msra.mxu0 0.0
    %1192 = vmatprep.subr.mxu0 0.0
    %1193 = vmatpush1.xpose.msra.mxu0 0.0
    %1194 = vmatprep.subr.mxu0 0.0
    %1195 = vmatpush1.xpose.msra.mxu0 0.0
    %1196 = vmatprep.subr.mxu0 0.0
    %1197 = vmatpush1.xpose.msra.mxu0 0.0
    %1198 = vmatprep.subr.mxu0 0.0
    %1199 = vmatpush1.xpose.msra.mxu0 0.0
    %1200 = vmatprep.subr.mxu0 0.0
    %1201 = vmatpush1.xpose.msra.mxu0 0.0
    %1202 = vmatprep.subr.mxu0 0.0
    %1203 = vmatpush1.xpose.msra.mxu0 0.0
    %1204 = vmatprep.subr.mxu0 0.0
    %1205 = vmatpush1.xpose.msra.mxu0 0.0
    %1206 = vmatprep.subr.mxu0 0.0
    %1207 = vmatpush1.xpose.msra.mxu0 0.0
    %1208 = vmatprep.subr.mxu0 0.0
    %1209 = vmatpush1.xpose.msra.mxu0 0.0
    %1210 = vmatprep.subr.mxu0 0.0
    %1211 = vmatpush1.xpose.msra.mxu0 0.0
    %1212 = vmatprep.subr.mxu0 0.0
    %1213 = vmatpush1.xpose.msra.mxu0 0.0
    %1214 = vmatprep.subr.mxu0 0.0
    %1215 = vmatpush1.xpose.msra.mxu0 0.0
    %1216 = vmatprep.subr.mxu0 0.0
    %1217 = vmatpush1.xpose.msra.mxu0 0.0
    %1218 = vmatprep.subr.mxu0 0.0
    %1219 = vmatpush1.xpose.msra.mxu0 0.0
    %1220 = vmatprep.subr.mxu0 0.0
    %1221 = vmatpush1.xpose.msra.mxu0 0.0
    %1222 = vmatprep.subr.mxu0 0.0
    %1223 = vmatpush1.xpose.msra.mxu0 0.0
    %1224 = vmatprep.subr.mxu0 0.0
    %1225 = vmatpush1.xpose.msra.mxu0 0.0
    %1226 = vmatprep.subr.mxu0 0.0
    %1227 = vmatpush1.xpose.msra.mxu0 0.0
    %1228 = vmatprep.subr.mxu0 0.0
    %1229 = vmatpush1.xpose.msra.mxu0 0.0
    %1230 = vmatprep.subr.mxu0 0.0
    %1231 = vmatpush1.xpose.msra.mxu0 0.0
    %1232 = vmatprep.subr.mxu0 0.0
    %1233 = vmatpush1.xpose.msra.mxu0 0.0
    %1234 = vmatprep.subr.mxu0 0.0
    %1235 = vmatpush1.xpose.msra.mxu0 0.0
    %1236 = vmatprep.subr.mxu0 0.0
    %1237 = vmatpush1.xpose.msra.mxu0 0.0
    %1238 = vmatprep.mubr.f32.mxu0 0.0
    %1239 = vmatmul.mubr.f32.gmra.mrb[0].mxu0 %v1170
    %v1240 = vpop.f32.mrb[0].mxu0
    %v1241 = vadd.f32 0.0, %v1240
    %v1242 = vpop.f32.mrb[0].mxu0
    %1243 = vdwg.mxu0
    %1244 = vrot.lane.b32.xlu0 %v150, 104
    %v1245 = vpop.permute.xlu0 %1244
    %1246 = vrot.lane.b32.xlu0 %v146, 72
    %v1247 = vpop.permute.xlu0 %1246
    %v1248 = vsel %vm154, %v1245, 0
    %v1250 = vsel %vm154, %v1247, 0
    %1252 = vmatprep.subr.mxu0 0.0
    %1253 = vmatpush1.xpose.msra.mxu0 %v1250
    %1254 = vmatprep.subr.mxu0 0.0
    %1255 = vmatpush1.xpose.msra.mxu0 0.0
    %1256 = vmatprep.subr.mxu0 0.0
    %1257 = vmatpush1.xpose.msra.mxu0 0.0
    %1258 = vmatprep.subr.mxu0 0.0
    %1259 = vmatpush1.xpose.msra.mxu0 0.0
    %1260 = vmatprep.subr.mxu0 0.0
    %1261 = vmatpush1.xpose.msra.mxu0 0.0
    %1262 = vmatprep.subr.mxu0 0.0
    %1263 = vmatpush1.xpose.msra.mxu0 0.0
    %1264 = vmatprep.subr.mxu0 0.0
    %1265 = vmatpush1.xpose.msra.mxu0 0.0
    %1266 = vmatprep.subr.mxu0 0.0
    %1267 = vmatpush1.xpose.msra.mxu0 0.0
    %1268 = vmatprep.subr.mxu0 0.0
    %1269 = vmatpush1.xpose.msra.mxu0 0.0
    %1270 = vmatprep.subr.mxu0 0.0
    %1271 = vmatpush1.xpose.msra.mxu0 0.0
    %1272 = vmatprep.subr.mxu0 0.0
    %1273 = vmatpush1.xpose.msra.mxu0 0.0
    %1274 = vmatprep.subr.mxu0 0.0
    %1275 = vmatpush1.xpose.msra.mxu0 0.0
    %1276 = vmatprep.subr.mxu0 0.0
    %1277 = vmatpush1.xpose.msra.mxu0 0.0
    %1278 = vmatprep.subr.mxu0 0.0
    %1279 = vmatpush1.xpose.msra.mxu0 0.0
    %1280 = vmatprep.subr.mxu0 0.0
    %1281 = vmatpush1.xpose.msra.mxu0 0.0
    %1282 = vmatprep.subr.mxu0 0.0
    %1283 = vmatpush1.xpose.msra.mxu0 0.0
    %1284 = vmatprep.subr.mxu0 0.0
    %1285 = vmatpush1.xpose.msra.mxu0 0.0
    %1286 = vmatprep.subr.mxu0 0.0
    %1287 = vmatpush1.xpose.msra.mxu0 0.0
    %1288 = vmatprep.subr.mxu0 0.0
    %1289 = vmatpush1.xpose.msra.mxu0 0.0
    %1290 = vmatprep.subr.mxu0 0.0
    %1291 = vmatpush1.xpose.msra.mxu0 0.0
    %1292 = vmatprep.subr.mxu0 0.0
    %1293 = vmatpush1.xpose.msra.mxu0 0.0
    %1294 = vmatprep.subr.mxu0 0.0
    %1295 = vmatpush1.xpose.msra.mxu0 0.0
    %1296 = vmatprep.subr.mxu0 0.0
    %1297 = vmatpush1.xpose.msra.mxu0 0.0
    %1298 = vmatprep.subr.mxu0 0.0
    %1299 = vmatpush1.xpose.msra.mxu0 0.0
    %1300 = vmatprep.subr.mxu0 0.0
    %1301 = vmatpush1.xpose.msra.mxu0 0.0
    %1302 = vmatprep.subr.mxu0 0.0
    %1303 = vmatpush1.xpose.msra.mxu0 0.0
    %1304 = vmatprep.subr.mxu0 0.0
    %1305 = vmatpush1.xpose.msra.mxu0 0.0
    %1306 = vmatprep.subr.mxu0 0.0
    %1307 = vmatpush1.xpose.msra.mxu0 0.0
    %1308 = vmatprep.subr.mxu0 0.0
    %1309 = vmatpush1.xpose.msra.mxu0 0.0
    %1310 = vmatprep.subr.mxu0 0.0
    %1311 = vmatpush1.xpose.msra.mxu0 0.0
    %1312 = vmatprep.subr.mxu0 0.0
    %1313 = vmatpush1.xpose.msra.mxu0 0.0
    %1314 = vmatprep.subr.mxu0 0.0
    %1315 = vmatpush1.xpose.msra.mxu0 0.0
    %1316 = vmatprep.mubr.f32.mxu0 0.0
    %1317 = vmatmul.mubr.f32.gmra.mrb[0].mxu0 %v1248
    %v1318 = vpop.f32.mrb[0].mxu0
    %v1319 = vadd.f32 0.0, %v1318
    %v1320 = vpop.f32.mrb[0].mxu0
    %1321 = vdwg.mxu0
    %v1322 = vsel %vm154, %v1241, -inf
    %1323 = vmax.xlane.f32.xlu0 %v1322
    %v1324 = vpop.xlane.xlu0 %1323
    %v1325 = vsel %vm154, %v1319, -inf
    %1326 = vmax.xlane.f32.xlu0 %v1325
    %v1327 = vpop.xlane.xlu0 %1326
    %v1328 = vsub.f32 %v1241, %v1324
    %v1329 = vsub.f32 %v1319, %v1327
    %v1330 = vmul.f32 %v1328, 1.442695
    %v1331 = vpow.pop %v1330
    %v1332 = vmul.f32 %v1329, 1.442695
    %v1333 = vpow.pop %v1332
    %v1334 = vsel %vm154, %v1331, 0.0
    %1335 = vadd.xlane.f32.xlu0 %v1334
    %v1336 = vpop.xlane.xlu0 %1335
    %v1337 = vsel %vm154, %v1333, 0.0
    %1338 = vadd.xlane.f32.xlu0 %v1337
    %v1339 = vpop.xlane.xlu0 %1338
    %v1340 = vrcp.pop %v1336
    %v1341 = vrcp.pop %v1339
    %v1342 = vmul.f32 %v1331, %v1340
    %v1343 = vmul.f32 %v1333, %v1341
    %1344 = vrot.lane.b32.xlu0 %v141, 40
    %v1345 = vpop.permute.xlu0 %1344
    %v1348 = vsel %vm154, %v1342, 0
    %1350 = vmatprep.subr.mxu0 0.0
    %1351 = vmatpush1.msra.mxu0 %v1345
    %1352 = vmatprep.subr.mxu0 0.0
    %1353 = vmatpush1.msra.mxu0 0.0
    %1354 = vmatprep.subr.mxu0 0.0
    %1355 = vmatpush1.msra.mxu0 0.0
    %1356 = vmatprep.subr.mxu0 0.0
    %1357 = vmatpush1.msra.mxu0 0.0
    %1358 = vmatprep.subr.mxu0 0.0
    %1359 = vmatpush1.msra.mxu0 0.0
    %1360 = vmatprep.subr.mxu0 0.0
    %1361 = vmatpush1.msra.mxu0 0.0
    %1362 = vmatprep.subr.mxu0 0.0
    %1363 = vmatpush1.msra.mxu0 0.0
    %1364 = vmatprep.subr.mxu0 0.0
    %1365 = vmatpush1.msra.mxu0 0.0
    %1366 = vmatprep.subr.mxu0 0.0
    %1367 = vmatpush1.msra.mxu0 0.0
    %1368 = vmatprep.subr.mxu0 0.0
    %1369 = vmatpush1.msra.mxu0 0.0
    %1370 = vmatprep.subr.mxu0 0.0
    %1371 = vmatpush1.msra.mxu0 0.0
    %1372 = vmatprep.subr.mxu0 0.0
    %1373 = vmatpush1.msra.mxu0 0.0
    %1374 = vmatprep.subr.mxu0 0.0
    %1375 = vmatpush1.msra.mxu0 0.0
    %1376 = vmatprep.subr.mxu0 0.0
    %1377 = vmatpush1.msra.mxu0 0.0
    %1378 = vmatprep.subr.mxu0 0.0
    %1379 = vmatpush1.msra.mxu0 0.0
    %1380 = vmatprep.subr.mxu0 0.0
    %1381 = vmatpush1.msra.mxu0 0.0
    %1382 = vmatprep.subr.mxu0 0.0
    %1383 = vmatpush1.msra.mxu0 0.0
    %1384 = vmatprep.subr.mxu0 0.0
    %1385 = vmatpush1.msra.mxu0 0.0
    %1386 = vmatprep.subr.mxu0 0.0
    %1387 = vmatpush1.msra.mxu0 0.0
    %1388 = vmatprep.subr.mxu0 0.0
    %1389 = vmatpush1.msra.mxu0 0.0
    %1390 = vmatprep.subr.mxu0 0.0
    %1391 = vmatpush1.msra.mxu0 0.0
    %1392 = vmatprep.subr.mxu0 0.0
    %1393 = vmatpush1.msra.mxu0 0.0
    %1394 = vmatprep.subr.mxu0 0.0
    %1395 = vmatpush1.msra.mxu0 0.0
    %1396 = vmatprep.subr.mxu0 0.0
    %1397 = vmatpush1.msra.mxu0 0.0
    %1398 = vmatprep.subr.mxu0 0.0
    %1399 = vmatpush1.msra.mxu0 0.0
    %1400 = vmatprep.subr.mxu0 0.0
    %1401 = vmatpush1.msra.mxu0 0.0
    %1402 = vmatprep.subr.mxu0 0.0
    %1403 = vmatpush1.msra.mxu0 0.0
    %1404 = vmatprep.subr.mxu0 0.0
    %1405 = vmatpush1.msra.mxu0 0.0
    %1406 = vmatprep.subr.mxu0 0.0
    %1407 = vmatpush1.msra.mxu0 0.0
    %1408 = vmatprep.subr.mxu0 0.0
    %1409 = vmatpush1.msra.mxu0 0.0
    %1410 = vmatprep.subr.mxu0 0.0
    %1411 = vmatpush1.msra.mxu0 0.0
    %1412 = vmatprep.subr.mxu0 0.0
    %1413 = vmatpush1.msra.mxu0 0.0
    %1414 = vmatprep.mubr.f32.mxu0 0.0
    %1415 = vmatmul.mubr.f32.gmra.mrb[0].mxu0 %v1348
    %v1416 = vpop.f32.mrb[0].mxu0
    %v1417 = vadd.f32 0.0, %v1416
    %v1418 = vpop.f32.mrb[0].mxu0
    %1419 = vdwg.mxu0
    %1420 = vrot.lane.b32.xlu0 %v146, 40
    %v1421 = vpop.permute.xlu0 %1420
    %v1424 = vsel %vm154, %v1343, 0
    %1426 = vmatprep.subr.mxu0 0.0
    %1427 = vmatpush1.msra.mxu0 %v1421
    %1428 = vmatprep.subr.mxu0 0.0
    %1429 = vmatpush1.msra.mxu0 0.0
    %1430 = vmatprep.subr.mxu0 0.0
    %1431 = vmatpush1.msra.mxu0 0.0
    %1432 = vmatprep.subr.mxu0 0.0
    %1433 = vmatpush1.msra.mxu0 0.0
    %1434 = vmatprep.subr.mxu0 0.0
    %1435 = vmatpush1.msra.mxu0 0.0
    %1436 = vmatprep.subr.mxu0 0.0
    %1437 = vmatpush1.msra.mxu0 0.0
    %1438 = vmatprep.subr.mxu0 0.0
    %1439 = vmatpush1.msra.mxu0 0.0
    %1440 = vmatprep.subr.mxu0 0.0
    %1441 = vmatpush1.msra.mxu0 0.0
    %1442 = vmatprep.subr.mxu0 0.0
    %1443 = vmatpush1.msra.mxu0 0.0
    %1444 = vmatprep.subr.mxu0 0.0
    %1445 = vmatpush1.msra.mxu0 0.0
    %1446 = vmatprep.subr.mxu0 0.0
    %1447 = vmatpush1.msra.mxu0 0.0
    %1448 = vmatprep.subr.mxu0 0.0
    %1449 = vmatpush1.msra.mxu0 0.0
    %1450 = vmatprep.subr.mxu0 0.0
    %1451 = vmatpush1.msra.mxu0 0.0
    %1452 = vmatprep.subr.mxu0 0.0
    %1453 = vmatpush1.msra.mxu0 0.0
    %1454 = vmatprep.subr.mxu0 0.0
    %1455 = vmatpush1.msra.mxu0 0.0
    %1456 = vmatprep.subr.mxu0 0.0
    %1457 = vmatpush1.msra.mxu0 0.0
    %1458 = vmatprep.subr.mxu0 0.0
    %1459 = vmatpush1.msra.mxu0 0.0
    %1460 = vmatprep.subr.mxu0 0.0
    %1461 = vmatpush1.msra.mxu0 0.0
    %1462 = vmatprep.subr.mxu0 0.0
    %1463 = vmatpush1.msra.mxu0 0.0
    %1464 = vmatprep.subr.mxu0 0.0
    %1465 = vmatpush1.msra.mxu0 0.0
    %1466 = vmatprep.subr.mxu0 0.0
    %1467 = vmatpush1.msra.mxu0 0.0
    %1468 = vmatprep.subr.mxu0 0.0
    %1469 = vmatpush1.msra.mxu0 0.0
    %1470 = vmatprep.subr.mxu0 0.0
    %1471 = vmatpush1.msra.mxu0 0.0
    %1472 = vmatprep.subr.mxu0 0.0
    %1473 = vmatpush1.msra.mxu0 0.0
    %1474 = vmatprep.subr.mxu0 0.0
    %1475 = vmatpush1.msra.mxu0 0.0
    %1476 = vmatprep.subr.mxu0 0.0
    %1477 = vmatpush1.msra.mxu0 0.0
    %1478 = vmatprep.subr.mxu0 0.0
    %1479 = vmatpush1.msra.mxu0 0.0
    %1480 = vmatprep.subr.mxu0 0.0
    %1481 = vmatpush1.msra.mxu0 0.0
    %1482 = vmatprep.subr.mxu0 0.0
    %1483 = vmatpush1.msra.mxu0 0.0
    %1484 = vmatprep.subr.mxu0 0.0
    %1485 = vmatpush1.msra.mxu0 0.0
    %1486 = vmatprep.subr.mxu0 0.0
    %1487 = vmatpush1.msra.mxu0 0.0
    %1488 = vmatprep.subr.mxu0 0.0
    %1489 = vmatpush1.msra.mxu0 0.0
    %1490 = vmatprep.mubr.f32.mxu0 0.0
    %1491 = vmatmul.mubr.f32.gmra.mrb[0].mxu0 %v1424
    %v1492 = vpop.f32.mrb[0].mxu0
    %v1493 = vadd.f32 0.0, %v1492
    %v1494 = vpop.f32.mrb[0].mxu0
    %1495 = vdwg.mxu0
    %1498 = vrot.lane.b32.xlu0 %v1417, 24
    %v1499 = vpop.permute.xlu0 %1498
    %1500 = vrot.lane.b32.xlu0 %v1493, 24
    %v1501 = vpop.permute.xlu0 %1500
    %vm1504 = vcmask 261312
    %1505 = vst.msk [vmem:[#allocation2] sm:$0xff] %vm1504, %v1499
    %1506 = vst.msk [vmem:[#allocation2 + $0x8] sm:$0xff] %vm1504, %v1501
    %v1507 = vld [vmem:[#allocation2] sm:$0xff]
    %v1508 = vld [vmem:[#allocation2 + $0x8] sm:$0xff]
    %v1509 = vadd.f32 %v27, %v1507
    %v1510 = vadd.f32 %v28, %v1508
    %v1511 = vsel %vm29, %v1509, 0.0
    %1512 = vadd.xlane.f32.xlu0 %v1511
    %v1513 = vpop.xlane.xlu0 %1512
    %v1514 = vsel %vm29, %v1510, 0.0
    %1515 = vadd.xlane.f32.xlu0 %v1514
    %v1516 = vpop.xlane.xlu0 %1515
    %v1517 = vmul.f32 %v1513, %v36
    %v1518 = vmul.f32 %v1516, %v36
    %v1519 = vsub.f32 %v1509, %v1517
    %v1520 = vsub.f32 %v1510, %v1518
    %v1521 = vmul.f32 %v1519, %v1519
    %v1522 = vmul.f32 %v1520, %v1520
    %v1523 = vsel %vm29, %v1521, 0.0
    %1524 = vadd.xlane.f32.xlu0 %v1523
    %v1525 = vpop.xlane.xlu0 %1524
    %v1526 = vsel %vm29, %v1522, 0.0
    %1527 = vadd.xlane.f32.xlu0 %v1526
    %v1528 = vpop.xlane.xlu0 %1527
    %v1529 = vmul.f32 %v1525, %v36
    %v1530 = vmul.f32 %v1528, %v36
    %v1531 = vadd.f32 %v1529, 1e-05
    %v1532 = vadd.f32 %v1530, 1e-05
    %v1533 = vrsqrt.pop %v1531
    %v1534 = vrsqrt.pop %v1532
    %v1535 = vmul.f32 %v1519, %v1533
    %v1536 = vmul.f32 %v1520, %v1534
    %v1537 = vld [vmem:[%s3] sm:$0xff]
    %v1538 = vld [vmem:[%s3 + $0x8] sm:$0xff]
    %v1539 = vld [vmem:[%s3 + $0x10] sm:$0xff]
    %v1540 = vld [vmem:[%s3 + $0x18] sm:$0xff]
    %v1541 = vld [vmem:[%s4] sm:$0x1]
    %v1543 = vlaneseq
    %v1544 = vshrl.u32 %v1543, 7
    %v1545 = vsub.s32 0, %v1544
    %v1546 = vrot.slane %v1541, %v1545
    %v1549 = vsel %vm29, %v1535, 0
    %v1552 = vsel %vm29, %v1536, 0
    %1554 = vmatprep.subr.mxu0 0.0
    %1555 = vmatpush1.msra.mxu0 %v1537
    %1556 = vmatprep.subr.mxu0 0.0
    %1557 = vmatpush1.msra.mxu0 %v1538
    %1558 = vmatprep.subr.mxu0 0.0
    %1559 = vmatpush1.msra.mxu0 %v1539
    %1560 = vmatprep.subr.mxu0 0.0
    %1561 = vmatpush1.msra.mxu0 %v1540
    %1562 = vmatprep.subr.mxu0 0.0
    %1563 = vmatpush1.msra.mxu0 0.0
    %1564 = vmatprep.subr.mxu0 0.0
    %1565 = vmatpush1.msra.mxu0 0.0
    %1566 = vmatprep.subr.mxu0 0.0
    %1567 = vmatpush1.msra.mxu0 0.0
    %1568 = vmatprep.subr.mxu0 0.0
    %1569 = vmatpush1.msra.mxu0 0.0
    %1570 = vmatprep.subr.mxu0 0.0
    %1571 = vmatpush1.msra.mxu0 0.0
    %1572 = vmatprep.subr.mxu0 0.0
    %1573 = vmatpush1.msra.mxu0 0.0
    %1574 = vmatprep.subr.mxu0 0.0
    %1575 = vmatpush1.msra.mxu0 0.0
    %1576 = vmatprep.subr.mxu0 0.0
    %1577 = vmatpush1.msra.mxu0 0.0
    %1578 = vmatprep.subr.mxu0 0.0
    %1579 = vmatpush1.msra.mxu0 0.0
    %1580 = vmatprep.subr.mxu0 0.0
    %1581 = vmatpush1.msra.mxu0 0.0
    %1582 = vmatprep.subr.mxu0 0.0
    %1583 = vmatpush1.msra.mxu0 0.0
    %1584 = vmatprep.subr.mxu0 0.0
    %1585 = vmatpush1.msra.mxu0 0.0
    %1586 = vmatprep.subr.mxu0 0.0
    %1587 = vmatpush1.msra.mxu0 0.0
    %1588 = vmatprep.subr.mxu0 0.0
    %1589 = vmatpush1.msra.mxu0 0.0
    %1590 = vmatprep.subr.mxu0 0.0
    %1591 = vmatpush1.msra.mxu0 0.0
    %1592 = vmatprep.subr.mxu0 0.0
    %1593 = vmatpush1.msra.mxu0 0.0
    %1594 = vmatprep.subr.mxu0 0.0
    %1595 = vmatpush1.msra.mxu0 0.0
    %1596 = vmatprep.subr.mxu0 0.0
    %1597 = vmatpush1.msra.mxu0 0.0
    %1598 = vmatprep.subr.mxu0 0.0
    %1599 = vmatpush1.msra.mxu0 0.0
    %1600 = vmatprep.subr.mxu0 0.0
    %1601 = vmatpush1.msra.mxu0 0.0
    %1602 = vmatprep.subr.mxu0 0.0
    %1603 = vmatpush1.msra.mxu0 0.0
    %1604 = vmatprep.subr.mxu0 0.0
    %1605 = vmatpush1.msra.mxu0 0.0
    %1606 = vmatprep.subr.mxu0 0.0
    %1607 = vmatpush1.msra.mxu0 0.0
    %1608 = vmatprep.subr.mxu0 0.0
    %1609 = vmatpush1.msra.mxu0 0.0
    %1610 = vmatprep.subr.mxu0 0.0
    %1611 = vmatpush1.msra.mxu0 0.0
    %1612 = vmatprep.subr.mxu0 0.0
    %1613 = vmatpush1.msra.mxu0 0.0
    %1614 = vmatprep.subr.mxu0 0.0
    %1615 = vmatpush1.msra.mxu0 0.0
    %1616 = vmatprep.subr.mxu0 0.0
    %1617 = vmatpush1.msra.mxu0 0.0
    %1618 = vmatprep.mubr.f32.mxu0 0.0
    %1619 = vmatmul.mubr.f32.gmra.mrb[0].mxu0 %v1549
    %v1620 = vpop.f32.mrb[0].mxu0
    %v1621 = vadd.f32 %v1546, %v1620
    %v1622 = vpop.f32.mrb[0].mxu0
    %1623 = vmatprep.mubr.f32.mxu0 0.0
    %1624 = vmatmul.mubr.f32.gmra.mrb[0].mxu0 %v1552
    %v1625 = vpop.f32.mrb[0].mxu0
    %v1626 = vadd.f32 %v1546, %v1625
    %v1627 = vpop.f32.mrb[0].mxu0
    %1628 = vdwg.mxu0
    %v1629 = vmul.f32 %v1621, 0.5
    %v1630 = vmul.f32 %v1626, 0.5
    %v1631 = vmul.f32 %v1621, 0.70710677
    %v1632 = vmul.f32 %v1626, 0.70710677
    %v1633 = verf.f32.pop %v1631
    %v1634 = verf.f32.pop %v1632
    %v1635 = vadd.f32 %v1633, 1.0
    %v1636 = vadd.f32 %v1634, 1.0
    %v1637 = vmul.f32 %v1629, %v1635
    %v1638 = vmul.f32 %v1630, %v1636
    %v1639 = vld [vmem:[%s5] sm:$0xff]
    %v1640 = vld [vmem:[%s5 + $0x8] sm:$0xff]
    %v1641 = vld [vmem:[%s5 + $0x10] sm:$0xff]
    %v1642 = vld [vmem:[%s5 + $0x18] sm:$0xff]
    %v1643 = vld [vmem:[%s5 + $0x20] sm:$0xff]
    %v1644 = vld [vmem:[%s5 + $0x28] sm:$0xff]
    %v1645 = vld [vmem:[%s5 + $0x30] sm:$0xff]
    %v1646 = vld [vmem:[%s5 + $0x38] sm:$0xff]
    %v1647 = vld [vmem:[%s5 + $0x40] sm:$0xff]
    %v1648 = vld [vmem:[%s5 + $0x48] sm:$0xff]
    %v1649 = vld [vmem:[%s5 + $0x50] sm:$0xff]
    %v1650 = vld [vmem:[%s5 + $0x58] sm:$0xff]
    %v1651 = vld [vmem:[%s5 + $0x60] sm:$0xff]
    %v1652 = vld [vmem:[%s5 + $0x68] sm:$0xff]
    %v1653 = vld [vmem:[%s5 + $0x70] sm:$0xff]
    %v1654 = vld [vmem:[%s5 + $0x78] sm:$0xff]
    %v1655 = vld [vmem:[%s6] sm:$0x1]
    %v1657 = vlaneseq
    %v1658 = vshrl.u32 %v1657, 7
    %v1659 = vsub.s32 0, %v1658
    %v1660 = vrot.slane %v1655, %v1659
    %1662 = vmatprep.subr.mxu0 0.0
    %1663 = vmatpush1.msra.mxu0 %v1639
    %1664 = vmatprep.subr.mxu0 0.0
    %1665 = vmatpush1.msra.mxu0 %v1640
    %1666 = vmatprep.subr.mxu0 0.0
    %1667 = vmatpush1.msra.mxu0 %v1641
    %1668 = vmatprep.subr.mxu0 0.0
    %1669 = vmatpush1.msra.mxu0 %v1642
    %1670 = vmatprep.subr.mxu0 0.0
    %1671 = vmatpush1.msra.mxu0 %v1643
    %1672 = vmatprep.subr.mxu0 0.0
    %1673 = vmatpush1.msra.mxu0 %v1644
    %1674 = vmatprep.subr.mxu0 0.0
    %1675 = vmatpush1.msra.mxu0 %v1645
    %1676 = vmatprep.subr.mxu0 0.0
    %1677 = vmatpush1.msra.mxu0 %v1646
    %1678 = vmatprep.subr.mxu0 0.0
    %1679 = vmatpush1.msra.mxu0 %v1647
    %1680 = vmatprep.subr.mxu0 0.0
    %1681 = vmatpush1.msra.mxu0 %v1648
    %1682 = vmatprep.subr.mxu0 0.0
    %1683 = vmatpush1.msra.mxu0 %v1649
    %1684 = vmatprep.subr.mxu0 0.0
    %1685 = vmatpush1.msra.mxu0 %v1650
    %1686 = vmatprep.subr.mxu0 0.0
    %1687 = vmatpush1.msra.mxu0 %v1651
    %1688 = vmatprep.subr.mxu0 0.0
    %1689 = vmatpush1.msra.mxu0 %v1652
    %1690 = vmatprep.subr.mxu0 0.0
    %1691 = vmatpush1.msra.mxu0 %v1653
    %1692 = vmatprep.subr.mxu0 0.0
    %1693 = vmatpush1.msra.mxu0 %v1654
    %1694 = vmatprep.subr.mxu0 0.0
    %1695 = vmatpush1.msra.mxu0 0.0
    %1696 = vmatprep.subr.mxu0 0.0
    %1697 = vmatpush1.msra.mxu0 0.0
    %1698 = vmatprep.subr.mxu0 0.0
    %1699 = vmatpush1.msra.mxu0 0.0
    %1700 = vmatprep.subr.mxu0 0.0
    %1701 = vmatpush1.msra.mxu0 0.0
    %1702 = vmatprep.subr.mxu0 0.0
    %1703 = vmatpush1.msra.mxu0 0.0
    %1704 = vmatprep.subr.mxu0 0.0
    %1705 = vmatpush1.msra.mxu0 0.0
    %1706 = vmatprep.subr.mxu0 0.0
    %1707 = vmatpush1.msra.mxu0 0.0
    %1708 = vmatprep.subr.mxu0 0.0
    %1709 = vmatpush1.msra.mxu0 0.0
    %1710 = vmatprep.subr.mxu0 0.0
    %1711 = vmatpush1.msra.mxu0 0.0
    %1712 = vmatprep.subr.mxu0 0.0
    %1713 = vmatpush1.msra.mxu0 0.0
    %1714 = vmatprep.subr.mxu0 0.0
    %1715 = vmatpush1.msra.mxu0 0.0
    %1716 = vmatprep.subr.mxu0 0.0
    %1717 = vmatpush1.msra.mxu0 0.0
    %1718 = vmatprep.subr.mxu0 0.0
    %1719 = vmatpush1.msra.mxu0 0.0
    %1720 = vmatprep.subr.mxu0 0.0
    %1721 = vmatpush1.msra.mxu0 0.0
    %1722 = vmatprep.subr.mxu0 0.0
    %1723 = vmatpush1.msra.mxu0 0.0
    %1724 = vmatprep.subr.mxu0 0.0
    %1725 = vmatpush1.msra.mxu0 0.0
    %1726 = vmatprep.mubr.f32.mxu0 0.0
    %1727 = vmatmul.mubr.f32.gmra.mrb[0].mxu0 %v1637
    %v1728 = vpop.f32.mrb[0].mxu0
    %v1729 = vadd.f32 %v1660, %v1728
    %v1730 = vpop.f32.mrb[0].mxu0
    %1731 = vmatprep.mubr.f32.mxu0 0.0
    %1732 = vmatmul.mubr.f32.gmra.mrb[0].mxu0 %v1638
    %v1733 = vpop.f32.mrb[0].mxu0
    %v1734 = vadd.f32 %v1660, %v1733
    %v1735 = vpop.f32.mrb[0].mxu0
    %1736 = vdwg.mxu0
    %v1737 = vadd.f32 %v1509, %v1729
    %v1738 = vadd.f32 %v1510, %v1734
    %1739 = vst.msk [vmem:[#allocation3] sm:$0xff] %vm29, %v1737
    %1740 = vst.msk [vmem:[#allocation3 + $0x8] sm:$0xff] %vm29, %v1738
    // Predicated region
    $region30: #{tpu_custom_call.1} parent=1 // pred_check
      _
    $region31: #{tpu_custom_call.1} parent=1 // pred_check_branch
      %1742 = sbr.rel (0) target = $region33
    $region32: #{tpu_custom_call.1} parent=1 // pred_region
      %s1744 = ssub.s32 256, 256
      %1745 = vsyncadd [#allocation4], %s1744
      %s1746 = sshll.u32 [#allocation3], 4
      %s1747 = int_to_ptr.vmem [resolvable:$true] %s1746
      %1752 = dma.vmem_to_hbm [thread:$0]  %s1747, 256, %s7, [#allocation4], 128, 128, 8
    $region33: #{tpu_custom_call.1} parent=1 // pred_fallthru
      _
    // Predicated region
    $region34: #{tpu_custom_call.1} parent=1 // pred_check
      _
    $region35: #{tpu_custom_call.1} parent=1 // pred_check_branch
      %1754 = sbr.rel (0) target = $region37
    $region36: #{tpu_custom_call.1} parent=1 // pred_region
      %1755 = dma.done [#allocation4], 256
    $region37: #{tpu_custom_call.1} parent=1 // pred_fallthru
      _
    %1756 = vsyncpa [#allocation4], 1

</llo_original>
